<compile_context>
chip_gen: v7x
topology: tpu7x:2x2x1
jax: 0.10.0
libtpu: 0.0.40
codegen_flags: <defaults>
</compile_context>

<pallas_src>
import math

import jax
import jax.numpy as jnp
from jax import lax
from jax.experimental import pallas as pl
from jax.experimental.pallas import tpu as pltpu


def _softplus(x):
    # Numerically stable softplus: max(x, 0) + log1p(exp(-|x|)).
    return jnp.maximum(x, 0.0) + jnp.log1p(jnp.exp(-jnp.abs(x)))


def bayes_linear_kernel(x_ref, wmean_ref, wstdp_ref, wnoise_ref,
                        bmean_ref, bstdp_ref, bnoise_ref, o_ref, acc_ref):
    k = pl.program_id(2)

    @pl.when(k == 0)
    def _():
        acc_ref[...] = jnp.zeros_like(acc_ref)

    # Sample this (tn, tk) weight tile: W = mean + softplus(std_param) * eps.
    w = wmean_ref[...] + _softplus(wstdp_ref[...]) * wnoise_ref[...]

    # acc += x @ W^T without materializing the transpose: contract the shared
    # in_features (last) dims of both operands so the MXU is fed directly from
    # the (out, in) layout.
    acc_ref[...] += lax.dot_general(
        x_ref[...], w,
        dimension_numbers=(((1,), (1,)), ((), ())),
        preferred_element_type=jnp.float32,
        precision=lax.Precision.HIGHEST)

    # Finalize: sample the bias once (last K step only) and write the tile out.
    @pl.when(k == pl.num_programs(2) - 1)
    def _():
        b = bmean_ref[...] + _softplus(bstdp_ref[...]) * bnoise_ref[...]
        o_ref[...] = (acc_ref[...] + b).astype(o_ref.dtype)


def _round_up(v, m):
    return ((v + m - 1) // m) * m


def bayes_linear_forward(x, weight_mean, weight_std_param, weight_noise,
                         bias_mean, bias_std_param, bias_noise,
                         *, tm=128, tn=256, tk=512):
    """y = x @ sample(W)^T + sample(b), tiled over an (M, N, K) grid."""
    batch, in_features = x.shape
    out_features = weight_mean.shape[0]
    dtype = x.dtype

    # Pad to lane/sublane-friendly extents and clamp the tiles so they divide
    # the padded extents exactly (padded extents are then re-rounded to the
    # chosen tile, so divisibility always holds).
    mp = _round_up(batch, 8)
    tm = min(tm, mp)
    mp = _round_up(mp, tm)

    np_ = _round_up(out_features, 128)
    tn = min(tn, np_)
    np_ = _round_up(np_, tn)

    kp = _round_up(in_features, 128)
    tk = min(tk, kp)
    kp = _round_up(kp, tk)

    # Zero padding is semantics-preserving: padded x columns are zero, padded
    # weight rows/cols contribute nothing, padded output rows/cols are sliced.
    xp = jnp.pad(x, ((0, mp - batch), (0, kp - in_features)))
    wm = jnp.pad(weight_mean, ((0, np_ - out_features), (0, kp - in_features)))
    ws = jnp.pad(weight_std_param,
                 ((0, np_ - out_features), (0, kp - in_features)))
    wn = jnp.pad(weight_noise,
                 ((0, np_ - out_features), (0, kp - in_features)))
    bm = jnp.pad(bias_mean, (0, np_ - out_features)).reshape(1, np_)
    bs = jnp.pad(bias_std_param, (0, np_ - out_features)).reshape(1, np_)
    bn = jnp.pad(bias_noise, (0, np_ - out_features)).reshape(1, np_)

    grid = (mp // tm, np_ // tn, kp // tk)

    out_padded = pl.pallas_call(
        bayes_linear_kernel,
        out_shape=jax.ShapeDtypeStruct((mp, np_), dtype),
        grid_spec=pltpu.PrefetchScalarGridSpec(
            num_scalar_prefetch=0,
            grid=grid,
            in_specs=[
                pl.BlockSpec((tm, tk), lambda i, j, k: (i, k)),   # x
                pl.BlockSpec((tn, tk), lambda i, j, k: (j, k)),   # weight_mean
                pl.BlockSpec((tn, tk), lambda i, j, k: (j, k)),   # weight_std_param
                pl.BlockSpec((tn, tk), lambda i, j, k: (j, k)),   # weight_noise
                pl.BlockSpec((1, tn), lambda i, j, k: (0, j)),    # bias_mean
                pl.BlockSpec((1, tn), lambda i, j, k: (0, j)),    # bias_std_param
                pl.BlockSpec((1, tn), lambda i, j, k: (0, j)),    # bias_noise
            ],
            out_specs=pl.BlockSpec((tm, tn), lambda i, j, k: (i, j)),
            scratch_shapes=[pltpu.VMEM((tm, tn), jnp.float32)],
        ),
        compiler_params=pltpu.CompilerParams(
            dimension_semantics=("parallel", "parallel", "arbitrary")),
    )(xp, wm, ws, wn, bm, bs, bn)

    return out_padded[:batch, :out_features]


def init_bayes_linear_params(key, in_features, out_features, init_std=0.05):
    """Deterministic init matching BayesLinear.reset_parameters(init_std=0.05)."""
    k_w, k_b = jax.random.split(key)
    w_mean_std = 1.0 / in_features
    b_mean_std = 1.0 / in_features
    std_param_init = math.log(math.exp(init_std) - 1.0)  # softplus^{-1}(init_std)

    weight_mean = w_mean_std * jax.random.normal(
        k_w, (out_features, in_features), dtype=jnp.float32)
    weight_std_param = jnp.full((out_features, in_features), std_param_init,
                                dtype=jnp.float32)
    bias_mean = b_mean_std * jax.random.normal(
        k_b, (out_features,), dtype=jnp.float32)
    bias_std_param = jnp.full((out_features,), std_param_init, dtype=jnp.float32)
    return weight_mean, weight_std_param, bias_mean, bias_std_param


if __name__ == "__main__":
    batch, in_features, out_features = 16, 512, 256

    root = jax.random.PRNGKey(0)
    k_params, k_x, k_wn, k_bn = jax.random.split(root, 4)

    (weight_mean, weight_std_param,
     bias_mean, bias_std_param) = init_bayes_linear_params(
        k_params, in_features, out_features)

    x = jax.random.normal(k_x, (batch, in_features), dtype=jnp.float32)
    # Noise corresponding to torch.randn_like at forward time.
    weight_noise = jax.random.normal(k_wn, (out_features, in_features),
                                     dtype=jnp.float32)
    bias_noise = jax.random.normal(k_bn, (out_features,), dtype=jnp.float32)

    # Small tiles so the demo exercises a real (1, 2, 2) grid with K-accumulation.
    out = bayes_linear_forward(x, weight_mean, weight_std_param, weight_noise,
                               bias_mean, bias_std_param, bias_noise,
                               tm=128, tn=128, tk=256)
    jax.block_until_ready(out)

    # Pure-JAX reference of the same semantics (stable softplus, f32 matmul).
    w_ref = weight_mean + jax.nn.softplus(weight_std_param) * weight_noise
    b_ref = bias_mean + jax.nn.softplus(bias_std_param) * bias_noise
    ref = jnp.dot(x, w_ref.T, precision=lax.Precision.HIGHEST) + b_ref

    assert out.shape == (batch, out_features)
    assert jnp.allclose(out, ref, atol=1e-4, rtol=1e-4), (
        float(jnp.max(jnp.abs(out - ref))))

    print("KERNEL_OK")
</pallas_src>

<mosaic_0001>
module attributes {stable_mosaic.version = 11 : i64} {
  func.func @bayes_linear_kernel(%arg0: i32, %arg1: i32, %arg2: i32, %arg3: memref<16x256xf32, #tpu.memory_space<vmem>>, %arg4: memref<128x256xf32, #tpu.memory_space<vmem>>, %arg5: memref<128x256xf32, #tpu.memory_space<vmem>>, %arg6: memref<128x256xf32, #tpu.memory_space<vmem>>, %arg7: memref<1x128xf32, #tpu.memory_space<vmem>>, %arg8: memref<1x128xf32, #tpu.memory_space<vmem>>, %arg9: memref<1x128xf32, #tpu.memory_space<vmem>>, %arg10: memref<16x128xf32, #tpu.memory_space<vmem>>, %arg11: memref<16x128xf32, #tpu.memory_space<vmem>>) attributes {dimension_semantics = [#tpu.dimension_semantics<parallel>, #tpu.dimension_semantics<parallel>, #tpu.dimension_semantics<arbitrary>], iteration_bounds = array<i64: 1, 2, 2>, scalar_prefetch = 0 : i64, scratch_operands = 1 : i64, tpu.core_type = #tpu.core_type<tc>, window_params = [{transform_indices = @transform_0, window_bounds = array<i64: 16, 256>}, {transform_indices = @transform_1, window_bounds = array<i64: 128, 256>}, {transform_indices = @transform_2, window_bounds = array<i64: 128, 256>}, {transform_indices = @transform_3, window_bounds = array<i64: 128, 256>}, {transform_indices = @transform_4, window_bounds = array<i64: 1, 128>}, {transform_indices = @transform_5, window_bounds = array<i64: 1, 128>}, {transform_indices = @transform_6, window_bounds = array<i64: 1, 128>}, {transform_indices = @transform_7, window_bounds = array<i64: 16, 128>}]} {
    %c0_i32 = arith.constant 0 : i32
    %0 = arith.cmpi eq, %arg2, %c0_i32 : i32
    %1 = arith.extui %0 : i1 to i32
    %c0_i32_0 = arith.constant 0 : i32
    %2 = arith.cmpi ne, %1, %c0_i32_0 : i32
    scf.if %2 {
      %cst_15 = arith.constant 0.000000e+00 : f32
      %24 = vector.broadcast %cst_15 : f32 to vector<16x128xf32>
      %c0_16 = arith.constant 0 : index
      %c0_17 = arith.constant 0 : index
      %25 = vector.load %arg11[%c0_16, %c0_17] : memref<16x128xf32, #tpu.memory_space<vmem>>, vector<16x128xf32>
      tpu.vector_store %arg11[%c0_16, %c0_17], %24 {strides = array<i32>} : memref<16x128xf32, #tpu.memory_space<vmem>>, vector<16x128xf32>,
    } else {
    }
    %c0 = arith.constant 0 : index
    %c0_1 = arith.constant 0 : index
    %3 = vector.load %arg4[%c0, %c0_1] : memref<128x256xf32, #tpu.memory_space<vmem>>, vector<128x256xf32>
    %c0_2 = arith.constant 0 : index
    %c0_3 = arith.constant 0 : index
    %4 = vector.load %arg5[%c0_2, %c0_3] : memref<128x256xf32, #tpu.memory_space<vmem>>, vector<128x256xf32>
    %cst = arith.constant 0.000000e+00 : f32
    %5 = vector.broadcast %cst : f32 to vector<128x256xf32>
    %6 = arith.maximumf %4, %5 : vector<128x256xf32>
    %7 = math.absf %4 : vector<128x256xf32>
    %cst_4 = arith.constant 0.000000e+00 : f32
    %8 = vector.broadcast %cst_4 : f32 to vector<128x256xf32>
    %9 = arith.subf %8, %7 : vector<128x256xf32>
    %10 = math.exp %9 : vector<128x256xf32>
    %11 = math.log1p %10 : vector<128x256xf32>
    %12 = arith.addf %6, %11 : vector<128x256xf32>
    %c0_5 = arith.constant 0 : index
    %c0_6 = arith.constant 0 : index
    %13 = vector.load %arg6[%c0_5, %c0_6] : memref<128x256xf32, #tpu.memory_space<vmem>>, vector<128x256xf32>
    %14 = arith.mulf %12, %13 : vector<128x256xf32>
    %15 = arith.addf %3, %14 : vector<128x256xf32>
    %c0_7 = arith.constant 0 : index
    %c0_8 = arith.constant 0 : index
    %16 = vector.load %arg11[%c0_7, %c0_8] : memref<16x128xf32, #tpu.memory_space<vmem>>, vector<16x128xf32>
    %c0_9 = arith.constant 0 : index
    %c0_10 = arith.constant 0 : index
    %17 = vector.load %arg3[%c0_9, %c0_10] : memref<16x256xf32, #tpu.memory_space<vmem>>, vector<16x256xf32>
    %cst_11 = arith.constant dense<0.000000e+00> : vector<16x128xf32>
    %18 = tpu.matmul %17, %15, %cst_11 {dimension_numbers = #tpu.dot_dimension_numbers<[1], [1], [0], [0], [0, 0, 1, 0], [], []>, precision = #tpu.contract_precision<fp32>} : vector<16x256xf32>, vector<128x256xf32>, vector<16x128xf32> -> vector<16x128xf32>
    %19 = arith.addf %16, %18 : vector<16x128xf32>
    %c0_12 = arith.constant 0 : index
    %c0_13 = arith.constant 0 : index
    %20 = vector.load %arg11[%c0_12, %c0_13] : memref<16x128xf32, #tpu.memory_space<vmem>>, vector<16x128xf32>
    tpu.vector_store %arg11[%c0_12, %c0_13], %19 {strides = array<i32>} : memref<16x128xf32, #tpu.memory_space<vmem>>, vector<16x128xf32>,
    %c1_i32 = arith.constant 1 : i32
    %21 = arith.cmpi eq, %arg2, %c1_i32 : i32
    %22 = arith.extui %21 : i1 to i32
    %c0_i32_14 = arith.constant 0 : i32
    %23 = arith.cmpi ne, %22, %c0_i32_14 : i32
    scf.if %23 {
      %c0_15 = arith.constant 0 : index
      %c0_16 = arith.constant 0 : index
      %24 = vector.load %arg7[%c0_15, %c0_16] : memref<1x128xf32, #tpu.memory_space<vmem>>, vector<1x128xf32>
      %c0_17 = arith.constant 0 : index
      %c0_18 = arith.constant 0 : index
      %25 = vector.load %arg8[%c0_17, %c0_18] : memref<1x128xf32, #tpu.memory_space<vmem>>, vector<1x128xf32>
      %cst_19 = arith.constant 0.000000e+00 : f32
      %26 = vector.broadcast %cst_19 : f32 to vector<1x128xf32>
      %27 = arith.maximumf %25, %26 : vector<1x128xf32>
      %28 = math.absf %25 : vector<1x128xf32>
      %cst_20 = arith.constant 0.000000e+00 : f32
      %29 = vector.broadcast %cst_20 : f32 to vector<1x128xf32>
      %30 = arith.subf %29, %28 : vector<1x128xf32>
      %31 = math.exp %30 : vector<1x128xf32>
      %32 = math.log1p %31 : vector<1x128xf32>
      %33 = arith.addf %27, %32 : vector<1x128xf32>
      %c0_21 = arith.constant 0 : index
      %c0_22 = arith.constant 0 : index
      %34 = vector.load %arg9[%c0_21, %c0_22] : memref<1x128xf32, #tpu.memory_space<vmem>>, vector<1x128xf32>
      %35 = arith.mulf %33, %34 : vector<1x128xf32>
      %36 = arith.addf %24, %35 : vector<1x128xf32>
      %c0_23 = arith.constant 0 : index
      %c0_24 = arith.constant 0 : index
      %37 = vector.load %arg11[%c0_23, %c0_24] : memref<16x128xf32, #tpu.memory_space<vmem>>, vector<16x128xf32>
      %38 = vector.broadcast %36 : vector<1x128xf32> to vector<16x128xf32>
      %39 = arith.addf %37, %38 : vector<16x128xf32>
      %c0_25 = arith.constant 0 : index
      %c0_26 = arith.constant 0 : index
      %40 = vector.load %arg10[%c0_25, %c0_26] : memref<16x128xf32, #tpu.memory_space<vmem>>, vector<16x128xf32>
      tpu.vector_store %arg10[%c0_25, %c0_26], %39 {strides = array<i32>} : memref<16x128xf32, #tpu.memory_space<vmem>>, vector<16x128xf32>,
    } else {
    }
    return
  }
  func.func @transform_0(%arg0: i32, %arg1: i32, %arg2: i32) -> (i32, i32) {
    %c0_i32 = arith.constant 0 : i32
    return %arg0, %arg2 : i32, i32
  }
  func.func @transform_1(%arg0: i32, %arg1: i32, %arg2: i32) -> (i32, i32) {
    %c0_i32 = arith.constant 0 : i32
    return %arg1, %arg2 : i32, i32
  }
  func.func @transform_2(%arg0: i32, %arg1: i32, %arg2: i32) -> (i32, i32) {
    %c0_i32 = arith.constant 0 : i32
    return %arg1, %arg2 : i32, i32
  }
  func.func @transform_3(%arg0: i32, %arg1: i32, %arg2: i32) -> (i32, i32) {
    %c0_i32 = arith.constant 0 : i32
    return %arg1, %arg2 : i32, i32
  }
  func.func @transform_4(%arg0: i32, %arg1: i32, %arg2: i32) -> (i32, i32) {
    %c0_i32 = arith.constant 0 : i32
    %c0_i32_0 = arith.constant 0 : i32
    return %c0_i32, %arg1 : i32, i32
  }
  func.func @transform_5(%arg0: i32, %arg1: i32, %arg2: i32) -> (i32, i32) {
    %c0_i32 = arith.constant 0 : i32
    %c0_i32_0 = arith.constant 0 : i32
    return %c0_i32, %arg1 : i32, i32
  }
  func.func @transform_6(%arg0: i32, %arg1: i32, %arg2: i32) -> (i32, i32) {
    %c0_i32 = arith.constant 0 : i32
    %c0_i32_0 = arith.constant 0 : i32
    return %c0_i32, %arg1 : i32, i32
  }
  func.func @transform_7(%arg0: i32, %arg1: i32, %arg2: i32) -> (i32, i32) {
    %c0_i32 = arith.constant 0 : i32
    return %arg0, %arg1 : i32, i32
  }
}

</mosaic_0001>

<llo_original>
// kernel: tpu_custom_call.1
$region0: #{tpu_custom_call.1}
  #allocation0 [shape = 'u32[]', space=smem, size = 0x4, offset = 0x4, fixed_abs, tag = 'smem constant byte address 0x4 - core index']
  #allocation1 [shape = 'u32[144,128]{1,0:T(1,128)}', space=vmem, size = 0x12000, scoped, tag = 'internal scratch']
  #allocation2 [shape = 'f32[16,128]{1,0:T(8,128)}', space=vmem, size = 0x2000, scoped, tag = 'scratch operand']
  %s0 = inlined_call_operand.hbm [shape: f32[16,512], index: 0, kind: input, shape index: {}]
  %s1 = inlined_call_operand.hbm [shape: f32[256,512], index: 1, kind: input, shape index: {}]
  %s2 = inlined_call_operand.hbm [shape: f32[256,512], index: 2, kind: input, shape index: {}]
  %s3 = inlined_call_operand.hbm [shape: f32[256,512], index: 3, kind: input, shape index: {}]
  %s4 = inlined_call_operand.vmem [shape: f32[1,256], index: 4, kind: input, shape index: {}]
  %s5 = inlined_call_operand.vmem [shape: f32[1,256], index: 5, kind: input, shape index: {}]
  %s6 = inlined_call_operand.vmem [shape: f32[1,256], index: 6, kind: input, shape index: {}]
  %s7 = inlined_call_operand.hbm [shape: f32[16,256], index: 7, kind: output, shape index: {}]
  %s8 = sld [smem:[#allocation0]]
  $region85: #{tpu_custom_call.1} parent=0
    _
  %s10 = ssub.s32 1, %s8
  %s11 = scalar_select 0, %s10, %s8
  $region1: #{tpu_custom_call.1} parent=0
    #allocation3 [shape = 'u8[32768]{0}', space=vmem, size = 0x8000, scoped, tag = 'input window, operand 0']
    #allocation4 [shape = 's32[2]{0}', space=sflag, size = 0x8, scoped, tag = 'scoped memory for tpu_custom_call.1']
    #allocation5 [shape = 's32[2]{0}', space=sflag, size = 0x8, scoped, tag = 'scoped memory for tpu_custom_call.1']
    #allocation6 [shape = 'u8[262144]{0}', space=vmem, size = 0x40000, scoped, tag = 'input window, operand 1']
    #allocation7 [shape = 's32[2]{0}', space=sflag, size = 0x8, scoped, tag = 'scoped memory for tpu_custom_call.1']
    #allocation8 [shape = 'u8[262144]{0}', space=vmem, size = 0x40000, scoped, tag = 'input window, operand 2']
    #allocation9 [shape = 'u8[262144]{0}', space=vmem, size = 0x40000, scoped, tag = 'input window, operand 3']
    #allocation10 [shape = 's32[2]{0}', space=sflag, size = 0x8, scoped, tag = 'scoped memory for tpu_custom_call.1']
    #allocation11 [shape = 'u8[16384]{0}', space=vmem, size = 0x4000, scoped, tag = 'output window, operand 0']
    %12 = vsyncpa [#allocation4], 0
    %s13 = scalar_lea.sflag [#allocation4], 1
    %14 = vsyncpa %s13, 0
    %15 = vsyncpa [#allocation7], 0
    %s16 = scalar_lea.sflag [#allocation7], 1
    %17 = vsyncpa %s16, 0
    %18 = vsyncpa [#allocation10], 0
    %s19 = scalar_lea.sflag [#allocation10], 1
    %20 = vsyncpa %s19, 0
    %21 = vsyncpa [#allocation5], 0
    %s22 = scalar_lea.sflag [#allocation5], 1
    %23 = vsyncpa %s22, 0
    loop: start=0, step=1, limit=6
    $region2: #{tpu_custom_call.1} parent=1 // loop_pre_header
      _
    $region3: #{tpu_custom_call.1} parent=1 // loop_header
      %s25 = sphi 0, %s29
      %p26 = scmp.ge.s32.totalorder %s25, 6
      %s32 = sphi 0, %s51
      %s33 = sphi 0, %s47
      %s34 = sphi 0, %s43
      %s35 = sphi 0, %s32
      %s36 = sphi 0, %s33
      %s37 = sphi 0, %s34
      %s38 = sphi 0, %s35
      %s39 = sphi 0, %s36
      %s40 = sphi 0, %s37
      %s56 = sphi 0, %s58
      %s59 = sphi 0, %s56
      %s60 = sphi 0, %s59
      %s76 = sphi 0, %s60
      %s84 = sphi 0, %s86
      %s87 = sphi 0, %s84
      %s88 = sphi 0, %s87
      %s104 = sphi 0, %s88
      %s112 = sphi 0, %s114
      %s115 = sphi 0, %s112
      %s116 = sphi 0, %s115
      %s132 = sphi 0, %s116
      %s140 = sphi 0, %s142
      %s143 = sphi 0, %s140
      %s144 = sphi 0, %s143
      %s160 = sphi 0, %s144
      %s166 = sphi 0, %s168
      %s169 = sphi 0, %s166
      %s170 = sphi 0, %s169
      %s186 = sphi 0, %s170
      %s192 = sphi 0, %s194
      %s195 = sphi 0, %s192
      %s196 = sphi 0, %s195
      %s212 = sphi 0, %s196
      %s218 = sphi 0, %s220
      %s221 = sphi 0, %s218
      %s222 = sphi 0, %s221
      %s238 = sphi 0, %s222
      %s246 = sphi 0, %s248
      %s249 = sphi 0, %s246
      %s250 = sphi 0, %s249
      %s266 = sphi 0, %s250
    $region4: #{tpu_custom_call.1} parent=1 // loop_header_branch
      %28 = sbr.rel (%p26) target = $region8
    $region5: #{tpu_custom_call.1} parent=1 // loop_body
      %s30 = ssub.s32 %s25, 1
      %s31 = ssub.s32 %s25, 2
      %s41 = sadd.s32 1, %s34
      %p42 = scmp.ge.s32.totalorder %s41, 2
      %s43 = scalar_select %p42, 0, %s41
      %s44 = sadd.s32 1, %s33
      %s45 = scalar_select %p42, %s44, %s33
      %p46 = scmp.ge.s32.totalorder %s45, 2
      %s47 = scalar_select %p46, 0, %s45
      %s48 = sadd.s32 1, %s32
      %s49 = scalar_select %p46, %s48, %s32
      %p50 = scmp.ge.s32.totalorder %s49, 1
      %s51 = scalar_select %p50, 0, %s49
      %s52 = ssub.s32 %s32, %s51
      %s53 = ssub.s32 %s34, %s43
      %s54 = sor.u32 %s52, %s53
      %p55 = scmp.eq.s32.totalorder %s54, 0
      %s57 = sadd.s32 %s56, 1
      %s58 = scalar_select %p55, %s56, %s57
      %p61 = pneg %p55
      %p62 = scmp.eq.s32.totalorder %s25, 3
      %p63 = por %p61, %p62
      %p64 = scmp.ne.s32.totalorder %s56, %s59
      %p65 = scmp.eq.s32.totalorder %s25, 0
      %p66 = por %p64, %p65
      %p67 = scmp.ne.s32.totalorder %s56, %s59
      %p68 = scmp.eq.s32.totalorder %s30, 3
      %p69 = por %p67, %p68
      %p70 = scmp.ne.s32.totalorder %s59, %s60
      %p71 = scmp.eq.s32.totalorder %s30, 0
      %p72 = por %p70, %p71
      %p73 = scmp.ne.s32.totalorder %s59, %s60
      %p74 = scmp.eq.s32.totalorder %s31, 3
      %p75 = por %p73, %p74
      %p77 = scmp.ne.s32.totalorder %s60, %s76
      %p78 = scmp.eq.s32.totalorder %s31, 0
      %p79 = por %p77, %p78
      %s80 = ssub.s32 %s33, %s47
      %s81 = ssub.s32 %s34, %s43
      %s82 = sor.u32 %s80, %s81
      %p83 = scmp.eq.s32.totalorder %s82, 0
      %s85 = sadd.s32 %s84, 1
      %s86 = scalar_select %p83, %s84, %s85
      %p89 = pneg %p83
      %p90 = scmp.eq.s32.totalorder %s25, 3
      %p91 = por %p89, %p90
      %p92 = scmp.ne.s32.totalorder %s84, %s87
      %p93 = scmp.eq.s32.totalorder %s25, 0
      %p94 = por %p92, %p93
      %p95 = scmp.ne.s32.totalorder %s84, %s87
      %p96 = scmp.eq.s32.totalorder %s30, 3
      %p97 = por %p95, %p96
      %p98 = scmp.ne.s32.totalorder %s87, %s88
      %p99 = scmp.eq.s32.totalorder %s30, 0
      %p100 = por %p98, %p99
      %p101 = scmp.ne.s32.totalorder %s87, %s88
      %p102 = scmp.eq.s32.totalorder %s31, 3
      %p103 = por %p101, %p102
      %p105 = scmp.ne.s32.totalorder %s88, %s104
      %p106 = scmp.eq.s32.totalorder %s31, 0
      %p107 = por %p105, %p106
      %s108 = ssub.s32 %s33, %s47
      %s109 = ssub.s32 %s34, %s43
      %s110 = sor.u32 %s108, %s109
      %p111 = scmp.eq.s32.totalorder %s110, 0
      %s113 = sadd.s32 %s112, 1
      %s114 = scalar_select %p111, %s112, %s113
      %p117 = pneg %p111
      %p118 = scmp.eq.s32.totalorder %s25, 3
      %p119 = por %p117, %p118
      %p120 = scmp.ne.s32.totalorder %s112, %s115
      %p121 = scmp.eq.s32.totalorder %s25, 0
      %p122 = por %p120, %p121
      %p123 = scmp.ne.s32.totalorder %s112, %s115
      %p124 = scmp.eq.s32.totalorder %s30, 3
      %p125 = por %p123, %p124
      %p126 = scmp.ne.s32.totalorder %s115, %s116
      %p127 = scmp.eq.s32.totalorder %s30, 0
      %p128 = por %p126, %p127
      %p129 = scmp.ne.s32.totalorder %s115, %s116
      %p130 = scmp.eq.s32.totalorder %s31, 3
      %p131 = por %p129, %p130
      %p133 = scmp.ne.s32.totalorder %s116, %s132
      %p134 = scmp.eq.s32.totalorder %s31, 0
      %p135 = por %p133, %p134
      %s136 = ssub.s32 %s33, %s47
      %s137 = ssub.s32 %s34, %s43
      %s138 = sor.u32 %s136, %s137
      %p139 = scmp.eq.s32.totalorder %s138, 0
      %s141 = sadd.s32 %s140, 1
      %s142 = scalar_select %p139, %s140, %s141
      %p145 = pneg %p139
      %p146 = scmp.eq.s32.totalorder %s25, 3
      %p147 = por %p145, %p146
      %p148 = scmp.ne.s32.totalorder %s140, %s143
      %p149 = scmp.eq.s32.totalorder %s25, 0
      %p150 = por %p148, %p149
      %p151 = scmp.ne.s32.totalorder %s140, %s143
      %p152 = scmp.eq.s32.totalorder %s30, 3
      %p153 = por %p151, %p152
      %p154 = scmp.ne.s32.totalorder %s143, %s144
      %p155 = scmp.eq.s32.totalorder %s30, 0
      %p156 = por %p154, %p155
      %p157 = scmp.ne.s32.totalorder %s143, %s144
      %p158 = scmp.eq.s32.totalorder %s31, 3
      %p159 = por %p157, %p158
      %p161 = scmp.ne.s32.totalorder %s144, %s160
      %p162 = scmp.eq.s32.totalorder %s31, 0
      %p163 = por %p161, %p162
      %s164 = ssub.s32 %s33, %s47
      %p165 = scmp.eq.s32.totalorder %s164, 0
      %s167 = sadd.s32 %s166, 1
      %s168 = scalar_select %p165, %s166, %s167
      %p171 = pneg %p165
      %p172 = scmp.eq.s32.totalorder %s25, 3
      %p173 = por %p171, %p172
      %p174 = scmp.ne.s32.totalorder %s166, %s169
      %p175 = scmp.eq.s32.totalorder %s25, 0
      %p176 = por %p174, %p175
      %p177 = scmp.ne.s32.totalorder %s166, %s169
      %p178 = scmp.eq.s32.totalorder %s30, 3
      %p179 = por %p177, %p178
      %p180 = scmp.ne.s32.totalorder %s169, %s170
      %p181 = scmp.eq.s32.totalorder %s30, 0
      %p182 = por %p180, %p181
      %p183 = scmp.ne.s32.totalorder %s169, %s170
      %p184 = scmp.eq.s32.totalorder %s31, 3
      %p185 = por %p183, %p184
      %p187 = scmp.ne.s32.totalorder %s170, %s186
      %p188 = scmp.eq.s32.totalorder %s31, 0
      %p189 = por %p187, %p188
      %s190 = ssub.s32 %s33, %s47
      %p191 = scmp.eq.s32.totalorder %s190, 0
      %s193 = sadd.s32 %s192, 1
      %s194 = scalar_select %p191, %s192, %s193
      %p197 = pneg %p191
      %p198 = scmp.eq.s32.totalorder %s25, 3
      %p199 = por %p197, %p198
      %p200 = scmp.ne.s32.totalorder %s192, %s195
      %p201 = scmp.eq.s32.totalorder %s25, 0
      %p202 = por %p200, %p201
      %p203 = scmp.ne.s32.totalorder %s192, %s195
      %p204 = scmp.eq.s32.totalorder %s30, 3
      %p205 = por %p203, %p204
      %p206 = scmp.ne.s32.totalorder %s195, %s196
      %p207 = scmp.eq.s32.totalorder %s30, 0
      %p208 = por %p206, %p207
      %p209 = scmp.ne.s32.totalorder %s195, %s196
      %p210 = scmp.eq.s32.totalorder %s31, 3
      %p211 = por %p209, %p210
      %p213 = scmp.ne.s32.totalorder %s196, %s212
      %p214 = scmp.eq.s32.totalorder %s31, 0
      %p215 = por %p213, %p214
      %s216 = ssub.s32 %s33, %s47
      %p217 = scmp.eq.s32.totalorder %s216, 0
      %s219 = sadd.s32 %s218, 1
      %s220 = scalar_select %p217, %s218, %s219
      %p223 = pneg %p217
      %p224 = scmp.eq.s32.totalorder %s25, 3
      %p225 = por %p223, %p224
      %p226 = scmp.ne.s32.totalorder %s218, %s221
      %p227 = scmp.eq.s32.totalorder %s25, 0
      %p228 = por %p226, %p227
      %p229 = scmp.ne.s32.totalorder %s218, %s221
      %p230 = scmp.eq.s32.totalorder %s30, 3
      %p231 = por %p229, %p230
      %p232 = scmp.ne.s32.totalorder %s221, %s222
      %p233 = scmp.eq.s32.totalorder %s30, 0
      %p234 = por %p232, %p233
      %p235 = scmp.ne.s32.totalorder %s221, %s222
      %p236 = scmp.eq.s32.totalorder %s31, 3
      %p237 = por %p235, %p236
      %p239 = scmp.ne.s32.totalorder %s222, %s238
      %p240 = scmp.eq.s32.totalorder %s31, 0
      %p241 = por %p239, %p240
      %s242 = ssub.s32 %s32, %s51
      %s243 = ssub.s32 %s33, %s47
      %s244 = sor.u32 %s242, %s243
      %p245 = scmp.eq.s32.totalorder %s244, 0
      %s247 = sadd.s32 %s246, 1
      %s248 = scalar_select %p245, %s246, %s247
      %p251 = pneg %p245
      %p252 = scmp.eq.s32.totalorder %s25, 3
      %p253 = por %p251, %p252
      %p254 = scmp.ne.s32.totalorder %s246, %s249
      %p255 = scmp.eq.s32.totalorder %s25, 0
      %p256 = por %p254, %p255
      %p257 = scmp.ne.s32.totalorder %s246, %s249
      %p258 = scmp.eq.s32.totalorder %s30, 3
      %p259 = por %p257, %p258
      %p260 = scmp.ne.s32.totalorder %s249, %s250
      %p261 = scmp.eq.s32.totalorder %s30, 0
      %p262 = por %p260, %p261
      %p263 = scmp.ne.s32.totalorder %s249, %s250
      %p264 = scmp.eq.s32.totalorder %s31, 3
      %p265 = por %p263, %p264
      %p267 = scmp.ne.s32.totalorder %s250, %s266
      %p268 = scmp.eq.s32.totalorder %s31, 0
      %p269 = por %p267, %p268
      %p270 = scmp.le.s32.totalorder 1, %s25
      %p271 = scmp.lt.s32.totalorder %s25, 5
      %p272 = pnand %p270, %p271
      %p273 = pneg %p272
      // Predicated region
      $region9: #{tpu_custom_call.1} parent=5 // pred_check
        _
      $region10: #{tpu_custom_call.1} parent=5 // pred_check_branch
        %275 = sbr.rel (%p272) target = $region12
      $region11: #{tpu_custom_call.1} parent=5 // pred_region
        %s276 = ssub.s32 %s25, 1
      $region12: #{tpu_custom_call.1} parent=5 // pred_fallthru
        _
      %p277 = scmp.lt.s32.totalorder %s25, 4
      // Predicated region
      $region13: #{tpu_custom_call.1} parent=5 // pred_check
        %p278 = pneg %p277
      $region14: #{tpu_custom_call.1} parent=5 // pred_check_branch
        %280 = sbr.rel (%p278) target = $region16
      $region15: #{tpu_custom_call.1} parent=5 // pred_region
        // Predicated region
        $region17: #{tpu_custom_call.1} parent=15 // pred_check
          %p281 = pneg %p66
        $region18: #{tpu_custom_call.1} parent=15 // pred_check_branch
          %283 = sbr.rel (%p281) target = $region20
        $region19: #{tpu_custom_call.1} parent=15 // pred_region
          %s284 = sand.u32 %s56, 1
          %s285 = scalar_lea.sflag [#allocation4], %s284
          %s286 = sand.u32 %s56, 1
          %s287 = smul.addr %s286, 32
          %s288 = scalar_lea.vmem [#allocation3], %s287
          %s289 = smul.u32 2, %s32
          %s290 = smul.u32 2, %s34
          %s292 = ssub.s32 512, 512
          %293 = vsyncadd %s285, %s292
          %s294 = smul.addr %s289, 4
          %s295 = sadd.s32 %s290, %s294
          %s296 = smul.addr %s295, 128
          %s297 = scalar_lea.hbm %s0, %s296
          %s298 = sshll.u32 %s288, 4
          %s299 = int_to_ptr.vmem [resolvable:$true] %s298
          %304 = dma.hbm_to_vmem [thread:$0]  %s297, 512, %s299, %s285, 512, 256, 16
        $region20: #{tpu_custom_call.1} parent=15 // pred_fallthru
          _
        // Predicated region
        $region21: #{tpu_custom_call.1} parent=15 // pred_check
          %p305 = pneg %p94
        $region22: #{tpu_custom_call.1} parent=15 // pred_check_branch
          %307 = sbr.rel (%p305) target = $region24
        $region23: #{tpu_custom_call.1} parent=15 // pred_region
          %s308 = sand.u32 %s25, 1
          %s309 = scalar_lea.sflag [#allocation7], %s308
          %s310 = sand.u32 %s84, 1
          %s311 = smul.addr %s310, 256
          %s312 = scalar_lea.vmem [#allocation6], %s311
          %s313 = smul.u32 16, %s33
          %s314 = smul.u32 2, %s34
          %s316 = ssub.s32 4096, 4096
          %317 = vsyncadd %s309, %s316
          %s318 = smul.addr %s313, 4
          %s319 = sadd.s32 %s314, %s318
          %s320 = smul.addr %s319, 128
          %s321 = scalar_lea.hbm %s1, %s320
          %s322 = sshll.u32 %s312, 4
          %s323 = int_to_ptr.vmem [resolvable:$true] %s322
          %328 = dma.hbm_to_vmem [thread:$0]  %s321, 4096, %s323, %s309, 512, 256, 16
        $region24: #{tpu_custom_call.1} parent=15 // pred_fallthru
          _
        // Predicated region
        $region25: #{tpu_custom_call.1} parent=15 // pred_check
          %p329 = pneg %p122
        $region26: #{tpu_custom_call.1} parent=15 // pred_check_branch
          %331 = sbr.rel (%p329) target = $region28
        $region27: #{tpu_custom_call.1} parent=15 // pred_region
          %s332 = sand.u32 %s25, 1
          %s333 = scalar_lea.sflag [#allocation7], %s332
          %s334 = sand.u32 %s112, 1
          %s335 = smul.addr %s334, 256
          %s336 = scalar_lea.vmem [#allocation8], %s335
          %s337 = smul.u32 16, %s33
          %s338 = smul.u32 2, %s34
          %s340 = ssub.s32 4096, 4096
          %341 = vsyncadd %s333, %s340
          %s342 = smul.addr %s337, 4
          %s343 = sadd.s32 %s338, %s342
          %s344 = smul.addr %s343, 128
          %s345 = scalar_lea.hbm %s2, %s344
          %s346 = sshll.u32 %s336, 4
          %s347 = int_to_ptr.vmem [resolvable:$true] %s346
          %352 = dma.hbm_to_vmem [thread:$0]  %s345, 4096, %s347, %s333, 512, 256, 16
        $region28: #{tpu_custom_call.1} parent=15 // pred_fallthru
          _
        // Predicated region
        $region29: #{tpu_custom_call.1} parent=15 // pred_check
          %p353 = pneg %p150
        $region30: #{tpu_custom_call.1} parent=15 // pred_check_branch
          %355 = sbr.rel (%p353) target = $region32
        $region31: #{tpu_custom_call.1} parent=15 // pred_region
          %s356 = sand.u32 %s140, 1
          %s357 = scalar_lea.sflag [#allocation10], %s356
          %s358 = sand.u32 %s140, 1
          %s359 = smul.addr %s358, 256
          %s360 = scalar_lea.vmem [#allocation9], %s359
          %s361 = smul.u32 16, %s33
          %s362 = smul.u32 2, %s34
          %s364 = ssub.s32 4096, 4096
          %365 = vsyncadd %s357, %s364
          %s366 = smul.addr %s361, 4
          %s367 = sadd.s32 %s362, %s366
          %s368 = smul.addr %s367, 128
          %s369 = scalar_lea.hbm %s3, %s368
          %s370 = sshll.u32 %s360, 4
          %s371 = int_to_ptr.vmem [resolvable:$true] %s370
          %376 = dma.hbm_to_vmem [thread:$0]  %s369, 4096, %s371, %s357, 512, 256, 16
        $region32: #{tpu_custom_call.1} parent=15 // pred_fallthru
          _
        // Predicated region
        $region33: #{tpu_custom_call.1} parent=15 // pred_check
          %p377 = pneg %p176
        $region34: #{tpu_custom_call.1} parent=15 // pred_check_branch
          %379 = sbr.rel (%p377) target = $region36
        $region35: #{tpu_custom_call.1} parent=15 // pred_region
          %p380 = scmp.lt.s32.totalorder %s33, 1
          %s381 = scalar_select %p380, %s33, 1
          %s382 = scalar_lea.vmem %s4, %s381
        $region36: #{tpu_custom_call.1} parent=15 // pred_fallthru
          _
        // Predicated region
        $region37: #{tpu_custom_call.1} parent=15 // pred_check
          %p383 = pneg %p202
        $region38: #{tpu_custom_call.1} parent=15 // pred_check_branch
          %385 = sbr.rel (%p383) target = $region40
        $region39: #{tpu_custom_call.1} parent=15 // pred_region
          %p386 = scmp.lt.s32.totalorder %s33, 1
          %s387 = scalar_select %p386, %s33, 1
          %s388 = scalar_lea.vmem %s5, %s387
        $region40: #{tpu_custom_call.1} parent=15 // pred_fallthru
          _
        // Predicated region
        $region41: #{tpu_custom_call.1} parent=15 // pred_check
          %p389 = pneg %p228
        $region42: #{tpu_custom_call.1} parent=15 // pred_check_branch
          %391 = sbr.rel (%p389) target = $region44
        $region43: #{tpu_custom_call.1} parent=15 // pred_region
          %p392 = scmp.lt.s32.totalorder %s33, 1
          %s393 = scalar_select %p392, %s33, 1
          %s394 = scalar_lea.vmem %s6, %s393
        $region44: #{tpu_custom_call.1} parent=15 // pred_fallthru
          _
      $region16: #{tpu_custom_call.1} parent=5 // pred_fallthru
        _
      %p395 = scmp.le.s32.totalorder 1, %s25
      %p396 = scmp.lt.s32.totalorder %s25, 5
      %p397 = pnand %p395, %p396
      %p398 = pneg %p397
      // Predicated region
      $region45: #{tpu_custom_call.1} parent=5 // pred_check
        _
      $region46: #{tpu_custom_call.1} parent=5 // pred_check_branch
        %400 = sbr.rel (%p397) target = $region48
      $region47: #{tpu_custom_call.1} parent=5 // pred_region
        %s401 = ssub.s32 %s25, 1
        %s402 = sand.u32 %s59, 1
        %s403 = scalar_lea.sflag [#allocation4], %s402
        %s404 = sand.u32 %s59, 1
        %s405 = smul.addr %s404, 32
        %s406 = scalar_lea.vmem [#allocation3], %s405
        // Predicated region
        $region49: #{tpu_custom_call.1} parent=47 // pred_check
          %p407 = pneg %p72
        $region50: #{tpu_custom_call.1} parent=47 // pred_check_branch
          %409 = sbr.rel (%p407) target = $region52
        $region51: #{tpu_custom_call.1} parent=47 // pred_region
          %410 = dma.done %s403, 512
        $region52: #{tpu_custom_call.1} parent=47 // pred_fallthru
          _
        %s411 = sand.u32 %s30, 1
        %s412 = scalar_lea.sflag [#allocation7], %s411
        %s413 = sand.u32 %s87, 1
        %s414 = smul.addr %s413, 256
        %s415 = scalar_lea.vmem [#allocation6], %s414
        // Predicated region
        $region53: #{tpu_custom_call.1} parent=47 // pred_check
          %p416 = pneg %p100
        $region54: #{tpu_custom_call.1} parent=47 // pred_check_branch
          %418 = sbr.rel (%p416) target = $region56
        $region55: #{tpu_custom_call.1} parent=47 // pred_region
          %419 = dma.done %s412, 4096
        $region56: #{tpu_custom_call.1} parent=47 // pred_fallthru
          _
        %s420 = sand.u32 %s30, 1
        %s421 = scalar_lea.sflag [#allocation7], %s420
        %s422 = sand.u32 %s115, 1
        %s423 = smul.addr %s422, 256
        %s424 = scalar_lea.vmem [#allocation8], %s423
        // Predicated region
        $region57: #{tpu_custom_call.1} parent=47 // pred_check
          %p425 = pneg %p128
        $region58: #{tpu_custom_call.1} parent=47 // pred_check_branch
          %427 = sbr.rel (%p425) target = $region60
        $region59: #{tpu_custom_call.1} parent=47 // pred_region
          %428 = dma.done %s421, 4096
        $region60: #{tpu_custom_call.1} parent=47 // pred_fallthru
          _
        %s429 = sand.u32 %s143, 1
        %s430 = scalar_lea.sflag [#allocation10], %s429
        %s431 = sand.u32 %s143, 1
        %s432 = smul.addr %s431, 256
        %s433 = scalar_lea.vmem [#allocation9], %s432
        // Predicated region
        $region61: #{tpu_custom_call.1} parent=47 // pred_check
          %p434 = pneg %p156
        $region62: #{tpu_custom_call.1} parent=47 // pred_check_branch
          %436 = sbr.rel (%p434) target = $region64
        $region63: #{tpu_custom_call.1} parent=47 // pred_region
          %437 = dma.done %s430, 4096
        $region64: #{tpu_custom_call.1} parent=47 // pred_fallthru
          _
        %s438 = sand.u32 %s59, 1
        %s439 = scalar_lea.sflag [#allocation4], %s438
        %s440 = sand.u32 %s59, 1
        %s441 = smul.addr %s440, 32
        %s442 = scalar_lea.vmem [#allocation3], %s441
        %p443 = pneg %p72
        %p444 = pneg %p69
        %s445 = sand.u32 %s30, 1
        %s446 = scalar_lea.sflag [#allocation7], %s445
        %s447 = sand.u32 %s87, 1
        %s448 = smul.addr %s447, 256
        %s449 = scalar_lea.vmem [#allocation6], %s448
        %p450 = pneg %p100
        %p451 = pneg %p97
        %s452 = sand.u32 %s30, 1
        %s453 = scalar_lea.sflag [#allocation7], %s452
        %s454 = sand.u32 %s115, 1
        %s455 = smul.addr %s454, 256
        %s456 = scalar_lea.vmem [#allocation8], %s455
        %p457 = pneg %p128
        %p458 = pneg %p125
        %s459 = sand.u32 %s143, 1
        %s460 = scalar_lea.sflag [#allocation10], %s459
        %s461 = sand.u32 %s143, 1
        %s462 = smul.addr %s461, 256
        %s463 = scalar_lea.vmem [#allocation9], %s462
        %p464 = pneg %p156
        %p465 = pneg %p153
        %p466 = scmp.lt.s32.totalorder %s36, 1
        %s467 = scalar_select %p466, %s36, 1
        %s468 = scalar_lea.vmem %s4, %s467
        %p469 = pneg %p182
        %p470 = pneg %p179
        %p471 = scmp.lt.s32.totalorder %s36, 1
        %s472 = scalar_select %p471, %s36, 1
        %s473 = scalar_lea.vmem %s5, %s472
        %p474 = pneg %p208
        %p475 = pneg %p205
        %p476 = scmp.lt.s32.totalorder %s36, 1
        %s477 = scalar_select %p476, %s36, 1
        %s478 = scalar_lea.vmem %s6, %s477
        %p479 = pneg %p234
        %p480 = pneg %p231
        %p481 = pneg %p262
        %p482 = pneg %p259
        %s483 = sand.u32 %s249, 1
        %s484 = scalar_lea.sflag [#allocation5], %s483
        %s485 = sand.u32 %s249, 1
        %s486 = smul.addr %s485, 16
        %s487 = scalar_lea.vmem [#allocation11], %s486
        %s488 = smul.u32 2, %s35
        %s489 = smul.u32 2, %s37
        %s490 = smul.u32 16, %s36
        %s491 = smul.u32 2, %s37
        %s492 = smul.u32 16, %s36
        %s493 = smul.u32 2, %s37
        %s494 = smul.u32 16, %s36
        %s495 = smul.u32 2, %s37
        %p496 = scmp.lt.s32.totalorder %s36, 1
        %s497 = scalar_select %p496, %s36, 1
        %s498 = scalar_lea.vmem %s4, %s497
        %p499 = scmp.lt.s32.totalorder %s36, 1
        %s500 = scalar_select %p499, %s36, 1
        %s501 = scalar_lea.vmem %s5, %s500
        %p502 = scmp.lt.s32.totalorder %s36, 1
        %s503 = scalar_select %p502, %s36, 1
        %s504 = scalar_lea.vmem %s6, %s503
        %s505 = smul.u32 2, %s35
        %p506 = scmp.eq.s32.totalorder %s37, 0
        // Predicated region
        $region65: #{tpu_custom_call.1} parent=47 // pred_check
          %p507 = pneg %p506
        $region66: #{tpu_custom_call.1} parent=47 // pred_check_branch
          %509 = sbr.rel (%p507) target = $region68
        $region67: #{tpu_custom_call.1} parent=47 // pred_region
          %510 = vst [vmem:[#allocation2] sm:$0xff] 0.0
          %511 = vst [vmem:[#allocation2 + $0x8] sm:$0xff] 0.0
        $region68: #{tpu_custom_call.1} parent=47 // pred_fallthru
          _
        %v512 = vld [vmem:[%s415] sm:$0xff]
        %v513 = vld [vmem:[%s415 + $0x8] sm:$0xff]
        %v514 = vld [vmem:[%s415 + $0x10] sm:$0xff]
        %v515 = vld [vmem:[%s415 + $0x18] sm:$0xff]
        %v516 = vld [vmem:[%s415 + $0x20] sm:$0xff]
        %v517 = vld [vmem:[%s415 + $0x28] sm:$0xff]
        %v518 = vld [vmem:[%s415 + $0x30] sm:$0xff]
        %v519 = vld [vmem:[%s415 + $0x38] sm:$0xff]
        %v520 = vld [vmem:[%s415 + $0x40] sm:$0xff]
        %v521 = vld [vmem:[%s415 + $0x48] sm:$0xff]
        %v522 = vld [vmem:[%s415 + $0x50] sm:$0xff]
        %v523 = vld [vmem:[%s415 + $0x58] sm:$0xff]
        %v524 = vld [vmem:[%s415 + $0x60] sm:$0xff]
        %v525 = vld [vmem:[%s415 + $0x68] sm:$0xff]
        %v526 = vld [vmem:[%s415 + $0x70] sm:$0xff]
        %v527 = vld [vmem:[%s415 + $0x78] sm:$0xff]
        %v528 = vld [vmem:[%s415 + $0x80] sm:$0xff]
        %v529 = vld [vmem:[%s415 + $0x88] sm:$0xff]
        %v530 = vld [vmem:[%s415 + $0x90] sm:$0xff]
        %v531 = vld [vmem:[%s415 + $0x98] sm:$0xff]
        %v532 = vld [vmem:[%s415 + $0xa0] sm:$0xff]
        %v533 = vld [vmem:[%s415 + $0xa8] sm:$0xff]
        %v534 = vld [vmem:[%s415 + $0xb0] sm:$0xff]
        %v535 = vld [vmem:[%s415 + $0xb8] sm:$0xff]
        %v536 = vld [vmem:[%s415 + $0xc0] sm:$0xff]
        %v537 = vld [vmem:[%s415 + $0xc8] sm:$0xff]
        %v538 = vld [vmem:[%s415 + $0xd0] sm:$0xff]
        %v539 = vld [vmem:[%s415 + $0xd8] sm:$0xff]
        %v540 = vld [vmem:[%s415 + $0xe0] sm:$0xff]
        %v541 = vld [vmem:[%s415 + $0xe8] sm:$0xff]
        %v542 = vld [vmem:[%s415 + $0xf0] sm:$0xff]
        %v543 = vld [vmem:[%s415 + $0xf8] sm:$0xff]
        %v544 = vld [vmem:[%s424] sm:$0xff]
        %v545 = vld [vmem:[%s424 + $0x8] sm:$0xff]
        %v546 = vld [vmem:[%s424 + $0x10] sm:$0xff]
        %v547 = vld [vmem:[%s424 + $0x18] sm:$0xff]
        %v548 = vld [vmem:[%s424 + $0x20] sm:$0xff]
        %v549 = vld [vmem:[%s424 + $0x28] sm:$0xff]
        %v550 = vld [vmem:[%s424 + $0x30] sm:$0xff]
        %v551 = vld [vmem:[%s424 + $0x38] sm:$0xff]
        %v552 = vld [vmem:[%s424 + $0x40] sm:$0xff]
        %v553 = vld [vmem:[%s424 + $0x48] sm:$0xff]
        %v554 = vld [vmem:[%s424 + $0x50] sm:$0xff]
        %v555 = vld [vmem:[%s424 + $0x58] sm:$0xff]
        %v556 = vld [vmem:[%s424 + $0x60] sm:$0xff]
        %v557 = vld [vmem:[%s424 + $0x68] sm:$0xff]
        %v558 = vld [vmem:[%s424 + $0x70] sm:$0xff]
        %v559 = vld [vmem:[%s424 + $0x78] sm:$0xff]
        %v560 = vld [vmem:[%s424 + $0x80] sm:$0xff]
        %v561 = vld [vmem:[%s424 + $0x88] sm:$0xff]
        %v562 = vld [vmem:[%s424 + $0x90] sm:$0xff]
        %v563 = vld [vmem:[%s424 + $0x98] sm:$0xff]
        %v564 = vld [vmem:[%s424 + $0xa0] sm:$0xff]
        %v565 = vld [vmem:[%s424 + $0xa8] sm:$0xff]
        %v566 = vld [vmem:[%s424 + $0xb0] sm:$0xff]
        %v567 = vld [vmem:[%s424 + $0xb8] sm:$0xff]
        %v568 = vld [vmem:[%s424 + $0xc0] sm:$0xff]
        %v569 = vld [vmem:[%s424 + $0xc8] sm:$0xff]
        %v570 = vld [vmem:[%s424 + $0xd0] sm:$0xff]
        %v571 = vld [vmem:[%s424 + $0xd8] sm:$0xff]
        %v572 = vld [vmem:[%s424 + $0xe0] sm:$0xff]
        %v573 = vld [vmem:[%s424 + $0xe8] sm:$0xff]
        %v574 = vld [vmem:[%s424 + $0xf0] sm:$0xff]
        %v575 = vld [vmem:[%s424 + $0xf8] sm:$0xff]
        %v576 = vmax.f32 %v544, 0.0
        %v577 = vmax.f32 %v545, 0.0
        %v578 = vmax.f32 %v546, 0.0
        %v579 = vmax.f32 %v547, 0.0
        %v580 = vmax.f32 %v548, 0.0
        %v581 = vmax.f32 %v549, 0.0
        %v582 = vmax.f32 %v550, 0.0
        %v583 = vmax.f32 %v551, 0.0
        %v584 = vmax.f32 %v552, 0.0
        %v585 = vmax.f32 %v553, 0.0
        %v586 = vmax.f32 %v554, 0.0
        %v587 = vmax.f32 %v555, 0.0
        %v588 = vmax.f32 %v556, 0.0
        %v589 = vmax.f32 %v557, 0.0
        %v590 = vmax.f32 %v558, 0.0
        %v591 = vmax.f32 %v559, 0.0
        %v592 = vmax.f32 %v560, 0.0
        %v593 = vmax.f32 %v561, 0.0
        %v594 = vmax.f32 %v562, 0.0
        %v595 = vmax.f32 %v563, 0.0
        %v596 = vmax.f32 %v564, 0.0
        %v597 = vmax.f32 %v565, 0.0
        %v598 = vmax.f32 %v566, 0.0
        %v599 = vmax.f32 %v567, 0.0
        %v600 = vmax.f32 %v568, 0.0
        %v601 = vmax.f32 %v569, 0.0
        %v602 = vmax.f32 %v570, 0.0
        %v603 = vmax.f32 %v571, 0.0
        %v604 = vmax.f32 %v572, 0.0
        %v605 = vmax.f32 %v573, 0.0
        %v606 = vmax.f32 %v574, 0.0
        %v607 = vmax.f32 %v575, 0.0
        %v608 = vand.u32 2147483647, %v544
        %v609 = vand.u32 2147483647, %v545
        %v610 = vand.u32 2147483647, %v546
        %v611 = vand.u32 2147483647, %v547
        %v612 = vand.u32 2147483647, %v548
        %v613 = vand.u32 2147483647, %v549
        %v614 = vand.u32 2147483647, %v550
        %v615 = vand.u32 2147483647, %v551
        %v616 = vand.u32 2147483647, %v552
        %v617 = vand.u32 2147483647, %v553
        %v618 = vand.u32 2147483647, %v554
        %v619 = vand.u32 2147483647, %v555
        %v620 = vand.u32 2147483647, %v556
        %v621 = vand.u32 2147483647, %v557
        %v622 = vand.u32 2147483647, %v558
        %v623 = vand.u32 2147483647, %v559
        %v624 = vand.u32 2147483647, %v560
        %v625 = vand.u32 2147483647, %v561
        %v626 = vand.u32 2147483647, %v562
        %v627 = vand.u32 2147483647, %v563
        %v628 = vand.u32 2147483647, %v564
        %v629 = vand.u32 2147483647, %v565
        %v630 = vand.u32 2147483647, %v566
        %v631 = vand.u32 2147483647, %v567
        %v632 = vand.u32 2147483647, %v568
        %v633 = vand.u32 2147483647, %v569
        %v634 = vand.u32 2147483647, %v570
        %v635 = vand.u32 2147483647, %v571
        %v636 = vand.u32 2147483647, %v572
        %v637 = vand.u32 2147483647, %v573
        %v638 = vand.u32 2147483647, %v574
        %v639 = vand.u32 2147483647, %v575
        %v640 = vsub.f32 0.0, %v608
        %v641 = vsub.f32 0.0, %v609
        %v642 = vsub.f32 0.0, %v610
        %v643 = vsub.f32 0.0, %v611
        %v644 = vsub.f32 0.0, %v612
        %v645 = vsub.f32 0.0, %v613
        %v646 = vsub.f32 0.0, %v614
        %v647 = vsub.f32 0.0, %v615
        %v648 = vsub.f32 0.0, %v616
        %v649 = vsub.f32 0.0, %v617
        %v650 = vsub.f32 0.0, %v618
        %v651 = vsub.f32 0.0, %v619
        %v652 = vsub.f32 0.0, %v620
        %v653 = vsub.f32 0.0, %v621
        %v654 = vsub.f32 0.0, %v622
        %v655 = vsub.f32 0.0, %v623
        %v656 = vsub.f32 0.0, %v624
        %v657 = vsub.f32 0.0, %v625
        %v658 = vsub.f32 0.0, %v626
        %v659 = vsub.f32 0.0, %v627
        %v660 = vsub.f32 0.0, %v628
        %v661 = vsub.f32 0.0, %v629
        %v662 = vsub.f32 0.0, %v630
        %v663 = vsub.f32 0.0, %v631
        %v664 = vsub.f32 0.0, %v632
        %v665 = vsub.f32 0.0, %v633
        %v666 = vsub.f32 0.0, %v634
        %v667 = vsub.f32 0.0, %v635
        %v668 = vsub.f32 0.0, %v636
        %v669 = vsub.f32 0.0, %v637
        %v670 = vsub.f32 0.0, %v638
        %v671 = vsub.f32 0.0, %v639
        %v672 = vmul.f32 %v640, 1.442695
        %v673 = vpow.pop %v672
        %v674 = vmul.f32 %v641, 1.442695
        %v675 = vpow.pop %v674
        %v676 = vmul.f32 %v642, 1.442695
        %v677 = vpow.pop %v676
        %v678 = vmul.f32 %v643, 1.442695
        %v679 = vpow.pop %v678
        %v680 = vmul.f32 %v644, 1.442695
        %v681 = vpow.pop %v680
        %v682 = vmul.f32 %v645, 1.442695
        %v683 = vpow.pop %v682
        %v684 = vmul.f32 %v646, 1.442695
        %v685 = vpow.pop %v684
        %v686 = vmul.f32 %v647, 1.442695
        %v687 = vpow.pop %v686
        %v688 = vmul.f32 %v648, 1.442695
        %v689 = vpow.pop %v688
        %v690 = vmul.f32 %v649, 1.442695
        %v691 = vpow.pop %v690
        %v692 = vmul.f32 %v650, 1.442695
        %v693 = vpow.pop %v692
        %v694 = vmul.f32 %v651, 1.442695
        %v695 = vpow.pop %v694
        %v696 = vmul.f32 %v652, 1.442695
        %v697 = vpow.pop %v696
        %v698 = vmul.f32 %v653, 1.442695
        %v699 = vpow.pop %v698
        %v700 = vmul.f32 %v654, 1.442695
        %v701 = vpow.pop %v700
        %v702 = vmul.f32 %v655, 1.442695
        %v703 = vpow.pop %v702
        %v704 = vmul.f32 %v656, 1.442695
        %v705 = vpow.pop %v704
        %v706 = vmul.f32 %v657, 1.442695
        %v707 = vpow.pop %v706
        %v708 = vmul.f32 %v658, 1.442695
        %v709 = vpow.pop %v708
        %v710 = vmul.f32 %v659, 1.442695
        %v711 = vpow.pop %v710
        %v712 = vmul.f32 %v660, 1.442695
        %v713 = vpow.pop %v712
        %v714 = vmul.f32 %v661, 1.442695
        %v715 = vpow.pop %v714
        %v716 = vmul.f32 %v662, 1.442695
        %v717 = vpow.pop %v716
        %v718 = vmul.f32 %v663, 1.442695
        %v719 = vpow.pop %v718
        %v720 = vmul.f32 %v664, 1.442695
        %v721 = vpow.pop %v720
        %v722 = vmul.f32 %v665, 1.442695
        %v723 = vpow.pop %v722
        %v724 = vmul.f32 %v666, 1.442695
        %v725 = vpow.pop %v724
        %v726 = vmul.f32 %v667, 1.442695
        %v727 = vpow.pop %v726
        %v728 = vmul.f32 %v668, 1.442695
        %v729 = vpow.pop %v728
        %v730 = vmul.f32 %v669, 1.442695
        %v731 = vpow.pop %v730
        %v732 = vmul.f32 %v670, 1.442695
        %v733 = vpow.pop %v732
        %v734 = vmul.f32 %v671, 1.442695
        %v735 = vpow.pop %v734
        %v736 = vadd.f32 %v673, 1.0
        %v737 = vlog2.pop %v736
        %v738 = vmul.f32 %v737, 0.6931472
        %v739 = vmul.f32 -0.5, %v673
        %v740 = vadd.f32 %v739, 1.0
        %v741 = vmul.f32 %v740, %v673
        %v742 = vand.u32 2147483647, %v673
        %vm743 = vcmp.lt.f32.partialorder %v742, 0.0004427343
        %v744 = vsel %vm743, %v741, %v738
        %v745 = vadd.f32 %v675, 1.0
        %v746 = vlog2.pop %v745
        %v747 = vmul.f32 %v746, 0.6931472
        %v748 = vmul.f32 -0.5, %v675
        %v749 = vadd.f32 %v748, 1.0
        %v750 = vmul.f32 %v749, %v675
        %v751 = vand.u32 2147483647, %v675
        %vm752 = vcmp.lt.f32.partialorder %v751, 0.0004427343
        %v753 = vsel %vm752, %v750, %v747
        %v754 = vadd.f32 %v677, 1.0
        %v755 = vlog2.pop %v754
        %v756 = vmul.f32 %v755, 0.6931472
        %v757 = vmul.f32 -0.5, %v677
        %v758 = vadd.f32 %v757, 1.0
        %v759 = vmul.f32 %v758, %v677
        %v760 = vand.u32 2147483647, %v677
        %vm761 = vcmp.lt.f32.partialorder %v760, 0.0004427343
        %v762 = vsel %vm761, %v759, %v756
        %v763 = vadd.f32 %v679, 1.0
        %v764 = vlog2.pop %v763
        %v765 = vmul.f32 %v764, 0.6931472
        %v766 = vmul.f32 -0.5, %v679
        %v767 = vadd.f32 %v766, 1.0
        %v768 = vmul.f32 %v767, %v679
        %v769 = vand.u32 2147483647, %v679
        %vm770 = vcmp.lt.f32.partialorder %v769, 0.0004427343
        %v771 = vsel %vm770, %v768, %v765
        %v772 = vadd.f32 %v681, 1.0
        %v773 = vlog2.pop %v772
        %v774 = vmul.f32 %v773, 0.6931472
        %v775 = vmul.f32 -0.5, %v681
        %v776 = vadd.f32 %v775, 1.0
        %v777 = vmul.f32 %v776, %v681
        %v778 = vand.u32 2147483647, %v681
        %vm779 = vcmp.lt.f32.partialorder %v778, 0.0004427343
        %v780 = vsel %vm779, %v777, %v774
        %v781 = vadd.f32 %v683, 1.0
        %v782 = vlog2.pop %v781
        %v783 = vmul.f32 %v782, 0.6931472
        %v784 = vmul.f32 -0.5, %v683
        %v785 = vadd.f32 %v784, 1.0
        %v786 = vmul.f32 %v785, %v683
        %v787 = vand.u32 2147483647, %v683
        %vm788 = vcmp.lt.f32.partialorder %v787, 0.0004427343
        %v789 = vsel %vm788, %v786, %v783
        %v790 = vadd.f32 %v685, 1.0
        %v791 = vlog2.pop %v790
        %v792 = vmul.f32 %v791, 0.6931472
        %v793 = vmul.f32 -0.5, %v685
        %v794 = vadd.f32 %v793, 1.0
        %v795 = vmul.f32 %v794, %v685
        %v796 = vand.u32 2147483647, %v685
        %vm797 = vcmp.lt.f32.partialorder %v796, 0.0004427343
        %v798 = vsel %vm797, %v795, %v792
        %v799 = vadd.f32 %v687, 1.0
        %v800 = vlog2.pop %v799
        %v801 = vmul.f32 %v800, 0.6931472
        %v802 = vmul.f32 -0.5, %v687
        %v803 = vadd.f32 %v802, 1.0
        %v804 = vmul.f32 %v803, %v687
        %v805 = vand.u32 2147483647, %v687
        %vm806 = vcmp.lt.f32.partialorder %v805, 0.0004427343
        %v807 = vsel %vm806, %v804, %v801
        %v808 = vadd.f32 %v689, 1.0
        %v809 = vlog2.pop %v808
        %v810 = vmul.f32 %v809, 0.6931472
        %v811 = vmul.f32 -0.5, %v689
        %v812 = vadd.f32 %v811, 1.0
        %v813 = vmul.f32 %v812, %v689
        %v814 = vand.u32 2147483647, %v689
        %vm815 = vcmp.lt.f32.partialorder %v814, 0.0004427343
        %v816 = vsel %vm815, %v813, %v810
        %v817 = vadd.f32 %v691, 1.0
        %v818 = vlog2.pop %v817
        %v819 = vmul.f32 %v818, 0.6931472
        %v820 = vmul.f32 -0.5, %v691
        %v821 = vadd.f32 %v820, 1.0
        %v822 = vmul.f32 %v821, %v691
        %v823 = vand.u32 2147483647, %v691
        %vm824 = vcmp.lt.f32.partialorder %v823, 0.0004427343
        %v825 = vsel %vm824, %v822, %v819
        %v826 = vadd.f32 %v693, 1.0
        %v827 = vlog2.pop %v826
        %v828 = vmul.f32 %v827, 0.6931472
        %v829 = vmul.f32 -0.5, %v693
        %v830 = vadd.f32 %v829, 1.0
        %v831 = vmul.f32 %v830, %v693
        %v832 = vand.u32 2147483647, %v693
        %vm833 = vcmp.lt.f32.partialorder %v832, 0.0004427343
        %v834 = vsel %vm833, %v831, %v828
        %v835 = vadd.f32 %v695, 1.0
        %v836 = vlog2.pop %v835
        %v837 = vmul.f32 %v836, 0.6931472
        %v838 = vmul.f32 -0.5, %v695
        %v839 = vadd.f32 %v838, 1.0
        %v840 = vmul.f32 %v839, %v695
        %v841 = vand.u32 2147483647, %v695
        %vm842 = vcmp.lt.f32.partialorder %v841, 0.0004427343
        %v843 = vsel %vm842, %v840, %v837
        %v844 = vadd.f32 %v697, 1.0
        %v845 = vlog2.pop %v844
        %v846 = vmul.f32 %v845, 0.6931472
        %v847 = vmul.f32 -0.5, %v697
        %v848 = vadd.f32 %v847, 1.0
        %v849 = vmul.f32 %v848, %v697
        %v850 = vand.u32 2147483647, %v697
        %vm851 = vcmp.lt.f32.partialorder %v850, 0.0004427343
        %v852 = vsel %vm851, %v849, %v846
        %v853 = vadd.f32 %v699, 1.0
        %v854 = vlog2.pop %v853
        %v855 = vmul.f32 %v854, 0.6931472
        %v856 = vmul.f32 -0.5, %v699
        %v857 = vadd.f32 %v856, 1.0
        %v858 = vmul.f32 %v857, %v699
        %v859 = vand.u32 2147483647, %v699
        %vm860 = vcmp.lt.f32.partialorder %v859, 0.0004427343
        %v861 = vsel %vm860, %v858, %v855
        %v862 = vadd.f32 %v701, 1.0
        %v863 = vlog2.pop %v862
        %v864 = vmul.f32 %v863, 0.6931472
        %v865 = vmul.f32 -0.5, %v701
        %v866 = vadd.f32 %v865, 1.0
        %v867 = vmul.f32 %v866, %v701
        %v868 = vand.u32 2147483647, %v701
        %vm869 = vcmp.lt.f32.partialorder %v868, 0.0004427343
        %v870 = vsel %vm869, %v867, %v864
        %v871 = vadd.f32 %v703, 1.0
        %v872 = vlog2.pop %v871
        %v873 = vmul.f32 %v872, 0.6931472
        %v874 = vmul.f32 -0.5, %v703
        %v875 = vadd.f32 %v874, 1.0
        %v876 = vmul.f32 %v875, %v703
        %v877 = vand.u32 2147483647, %v703
        %vm878 = vcmp.lt.f32.partialorder %v877, 0.0004427343
        %v879 = vsel %vm878, %v876, %v873
        %v880 = vadd.f32 %v705, 1.0
        %v881 = vlog2.pop %v880
        %v882 = vmul.f32 %v881, 0.6931472
        %v883 = vmul.f32 -0.5, %v705
        %v884 = vadd.f32 %v883, 1.0
        %v885 = vmul.f32 %v884, %v705
        %v886 = vand.u32 2147483647, %v705
        %vm887 = vcmp.lt.f32.partialorder %v886, 0.0004427343
        %v888 = vsel %vm887, %v885, %v882
        %v889 = vadd.f32 %v707, 1.0
        %v890 = vlog2.pop %v889
        %v891 = vmul.f32 %v890, 0.6931472
        %v892 = vmul.f32 -0.5, %v707
        %v893 = vadd.f32 %v892, 1.0
        %v894 = vmul.f32 %v893, %v707
        %v895 = vand.u32 2147483647, %v707
        %vm896 = vcmp.lt.f32.partialorder %v895, 0.0004427343
        %v897 = vsel %vm896, %v894, %v891
        %v898 = vadd.f32 %v709, 1.0
        %v899 = vlog2.pop %v898
        %v900 = vmul.f32 %v899, 0.6931472
        %v901 = vmul.f32 -0.5, %v709
        %v902 = vadd.f32 %v901, 1.0
        %v903 = vmul.f32 %v902, %v709
        %v904 = vand.u32 2147483647, %v709
        %vm905 = vcmp.lt.f32.partialorder %v904, 0.0004427343
        %v906 = vsel %vm905, %v903, %v900
        %v907 = vadd.f32 %v711, 1.0
        %v908 = vlog2.pop %v907
        %v909 = vmul.f32 %v908, 0.6931472
        %v910 = vmul.f32 -0.5, %v711
        %v911 = vadd.f32 %v910, 1.0
        %v912 = vmul.f32 %v911, %v711
        %v913 = vand.u32 2147483647, %v711
        %vm914 = vcmp.lt.f32.partialorder %v913, 0.0004427343
        %v915 = vsel %vm914, %v912, %v909
        %v916 = vadd.f32 %v713, 1.0
        %v917 = vlog2.pop %v916
        %v918 = vmul.f32 %v917, 0.6931472
        %v919 = vmul.f32 -0.5, %v713
        %v920 = vadd.f32 %v919, 1.0
        %v921 = vmul.f32 %v920, %v713
        %v922 = vand.u32 2147483647, %v713
        %vm923 = vcmp.lt.f32.partialorder %v922, 0.0004427343
        %v924 = vsel %vm923, %v921, %v918
        %v925 = vadd.f32 %v715, 1.0
        %v926 = vlog2.pop %v925
        %v927 = vmul.f32 %v926, 0.6931472
        %v928 = vmul.f32 -0.5, %v715
        %v929 = vadd.f32 %v928, 1.0
        %v930 = vmul.f32 %v929, %v715
        %v931 = vand.u32 2147483647, %v715
        %vm932 = vcmp.lt.f32.partialorder %v931, 0.0004427343
        %v933 = vsel %vm932, %v930, %v927
        %v934 = vadd.f32 %v717, 1.0
        %v935 = vlog2.pop %v934
        %v936 = vmul.f32 %v935, 0.6931472
        %v937 = vmul.f32 -0.5, %v717
        %v938 = vadd.f32 %v937, 1.0
        %v939 = vmul.f32 %v938, %v717
        %v940 = vand.u32 2147483647, %v717
        %vm941 = vcmp.lt.f32.partialorder %v940, 0.0004427343
        %v942 = vsel %vm941, %v939, %v936
        %v943 = vadd.f32 %v719, 1.0
        %v944 = vlog2.pop %v943
        %v945 = vmul.f32 %v944, 0.6931472
        %v946 = vmul.f32 -0.5, %v719
        %v947 = vadd.f32 %v946, 1.0
        %v948 = vmul.f32 %v947, %v719
        %v949 = vand.u32 2147483647, %v719
        %vm950 = vcmp.lt.f32.partialorder %v949, 0.0004427343
        %v951 = vsel %vm950, %v948, %v945
        %v952 = vadd.f32 %v721, 1.0
        %v953 = vlog2.pop %v952
        %v954 = vmul.f32 %v953, 0.6931472
        %v955 = vmul.f32 -0.5, %v721
        %v956 = vadd.f32 %v955, 1.0
        %v957 = vmul.f32 %v956, %v721
        %v958 = vand.u32 2147483647, %v721
        %vm959 = vcmp.lt.f32.partialorder %v958, 0.0004427343
        %v960 = vsel %vm959, %v957, %v954
        %v961 = vadd.f32 %v723, 1.0
        %v962 = vlog2.pop %v961
        %v963 = vmul.f32 %v962, 0.6931472
        %v964 = vmul.f32 -0.5, %v723
        %v965 = vadd.f32 %v964, 1.0
        %v966 = vmul.f32 %v965, %v723
        %v967 = vand.u32 2147483647, %v723
        %vm968 = vcmp.lt.f32.partialorder %v967, 0.0004427343
        %v969 = vsel %vm968, %v966, %v963
        %v970 = vadd.f32 %v725, 1.0
        %v971 = vlog2.pop %v970
        %v972 = vmul.f32 %v971, 0.6931472
        %v973 = vmul.f32 -0.5, %v725
        %v974 = vadd.f32 %v973, 1.0
        %v975 = vmul.f32 %v974, %v725
        %v976 = vand.u32 2147483647, %v725
        %vm977 = vcmp.lt.f32.partialorder %v976, 0.0004427343
        %v978 = vsel %vm977, %v975, %v972
        %v979 = vadd.f32 %v727, 1.0
        %v980 = vlog2.pop %v979
        %v981 = vmul.f32 %v980, 0.6931472
        %v982 = vmul.f32 -0.5, %v727
        %v983 = vadd.f32 %v982, 1.0
        %v984 = vmul.f32 %v983, %v727
        %v985 = vand.u32 2147483647, %v727
        %vm986 = vcmp.lt.f32.partialorder %v985, 0.0004427343
        %v987 = vsel %vm986, %v984, %v981
        %v988 = vadd.f32 %v729, 1.0
        %v989 = vlog2.pop %v988
        %v990 = vmul.f32 %v989, 0.6931472
        %v991 = vmul.f32 -0.5, %v729
        %v992 = vadd.f32 %v991, 1.0
        %v993 = vmul.f32 %v992, %v729
        %v994 = vand.u32 2147483647, %v729
        %vm995 = vcmp.lt.f32.partialorder %v994, 0.0004427343
        %v996 = vsel %vm995, %v993, %v990
        %v997 = vadd.f32 %v731, 1.0
        %v998 = vlog2.pop %v997
        %v999 = vmul.f32 %v998, 0.6931472
        %v1000 = vmul.f32 -0.5, %v731
        %v1001 = vadd.f32 %v1000, 1.0
        %v1002 = vmul.f32 %v1001, %v731
        %v1003 = vand.u32 2147483647, %v731
        %vm1004 = vcmp.lt.f32.partialorder %v1003, 0.0004427343
        %v1005 = vsel %vm1004, %v1002, %v999
        %v1006 = vadd.f32 %v733, 1.0
        %v1007 = vlog2.pop %v1006
        %v1008 = vmul.f32 %v1007, 0.6931472
        %v1009 = vmul.f32 -0.5, %v733
        %v1010 = vadd.f32 %v1009, 1.0
        %v1011 = vmul.f32 %v1010, %v733
        %v1012 = vand.u32 2147483647, %v733
        %vm1013 = vcmp.lt.f32.partialorder %v1012, 0.0004427343
        %v1014 = vsel %vm1013, %v1011, %v1008
        %v1015 = vadd.f32 %v735, 1.0
        %v1016 = vlog2.pop %v1015
        %v1017 = vmul.f32 %v1016, 0.6931472
        %v1018 = vmul.f32 -0.5, %v735
        %v1019 = vadd.f32 %v1018, 1.0
        %v1020 = vmul.f32 %v1019, %v735
        %v1021 = vand.u32 2147483647, %v735
        %vm1022 = vcmp.lt.f32.partialorder %v1021, 0.0004427343
        %v1023 = vsel %vm1022, %v1020, %v1017
        %v1024 = vadd.f32 %v576, %v744
        %v1025 = vadd.f32 %v577, %v753
        %v1026 = vadd.f32 %v578, %v762
        %v1027 = vadd.f32 %v579, %v771
        %v1028 = vadd.f32 %v580, %v780
        %v1029 = vadd.f32 %v581, %v789
        %v1030 = vadd.f32 %v582, %v798
        %v1031 = vadd.f32 %v583, %v807
        %v1032 = vadd.f32 %v584, %v816
        %v1033 = vadd.f32 %v585, %v825
        %v1034 = vadd.f32 %v586, %v834
        %v1035 = vadd.f32 %v587, %v843
        %v1036 = vadd.f32 %v588, %v852
        %v1037 = vadd.f32 %v589, %v861
        %v1038 = vadd.f32 %v590, %v870
        %v1039 = vadd.f32 %v591, %v879
        %v1040 = vadd.f32 %v592, %v888
        %v1041 = vadd.f32 %v593, %v897
        %v1042 = vadd.f32 %v594, %v906
        %v1043 = vadd.f32 %v595, %v915
        %v1044 = vadd.f32 %v596, %v924
        %v1045 = vadd.f32 %v597, %v933
        %v1046 = vadd.f32 %v598, %v942
        %v1047 = vadd.f32 %v599, %v951
        %v1048 = vadd.f32 %v600, %v960
        %v1049 = vadd.f32 %v601, %v969
        %v1050 = vadd.f32 %v602, %v978
        %v1051 = vadd.f32 %v603, %v987
        %v1052 = vadd.f32 %v604, %v996
        %v1053 = vadd.f32 %v605, %v1005
        %v1054 = vadd.f32 %v606, %v1014
        %v1055 = vadd.f32 %v607, %v1023
        %v1056 = vld [vmem:[%s433] sm:$0xff]
        %v1057 = vld [vmem:[%s433 + $0x8] sm:$0xff]
        %v1058 = vld [vmem:[%s433 + $0x10] sm:$0xff]
        %v1059 = vld [vmem:[%s433 + $0x18] sm:$0xff]
        %v1060 = vld [vmem:[%s433 + $0x20] sm:$0xff]
        %v1061 = vld [vmem:[%s433 + $0x28] sm:$0xff]
        %v1062 = vld [vmem:[%s433 + $0x30] sm:$0xff]
        %v1063 = vld [vmem:[%s433 + $0x38] sm:$0xff]
        %v1064 = vld [vmem:[%s433 + $0x40] sm:$0xff]
        %v1065 = vld [vmem:[%s433 + $0x48] sm:$0xff]
        %v1066 = vld [vmem:[%s433 + $0x50] sm:$0xff]
        %v1067 = vld [vmem:[%s433 + $0x58] sm:$0xff]
        %v1068 = vld [vmem:[%s433 + $0x60] sm:$0xff]
        %v1069 = vld [vmem:[%s433 + $0x68] sm:$0xff]
        %v1070 = vld [vmem:[%s433 + $0x70] sm:$0xff]
        %v1071 = vld [vmem:[%s433 + $0x78] sm:$0xff]
        %v1072 = vld [vmem:[%s433 + $0x80] sm:$0xff]
        %v1073 = vld [vmem:[%s433 + $0x88] sm:$0xff]
        %v1074 = vld [vmem:[%s433 + $0x90] sm:$0xff]
        %v1075 = vld [vmem:[%s433 + $0x98] sm:$0xff]
        %v1076 = vld [vmem:[%s433 + $0xa0] sm:$0xff]
        %v1077 = vld [vmem:[%s433 + $0xa8] sm:$0xff]
        %v1078 = vld [vmem:[%s433 + $0xb0] sm:$0xff]
        %v1079 = vld [vmem:[%s433 + $0xb8] sm:$0xff]
        %v1080 = vld [vmem:[%s433 + $0xc0] sm:$0xff]
        %v1081 = vld [vmem:[%s433 + $0xc8] sm:$0xff]
        %v1082 = vld [vmem:[%s433 + $0xd0] sm:$0xff]
        %v1083 = vld [vmem:[%s433 + $0xd8] sm:$0xff]
        %v1084 = vld [vmem:[%s433 + $0xe0] sm:$0xff]
        %v1085 = vld [vmem:[%s433 + $0xe8] sm:$0xff]
        %v1086 = vld [vmem:[%s433 + $0xf0] sm:$0xff]
        %v1087 = vld [vmem:[%s433 + $0xf8] sm:$0xff]
        %v1088 = vmul.f32 %v1024, %v1056
        %v1089 = vmul.f32 %v1025, %v1057
        %v1090 = vmul.f32 %v1026, %v1058
        %v1091 = vmul.f32 %v1027, %v1059
        %v1092 = vmul.f32 %v1028, %v1060
        %v1093 = vmul.f32 %v1029, %v1061
        %v1094 = vmul.f32 %v1030, %v1062
        %v1095 = vmul.f32 %v1031, %v1063
        %v1096 = vmul.f32 %v1032, %v1064
        %v1097 = vmul.f32 %v1033, %v1065
        %v1098 = vmul.f32 %v1034, %v1066
        %v1099 = vmul.f32 %v1035, %v1067
        %v1100 = vmul.f32 %v1036, %v1068
        %v1101 = vmul.f32 %v1037, %v1069
        %v1102 = vmul.f32 %v1038, %v1070
        %v1103 = vmul.f32 %v1039, %v1071
        %v1104 = vmul.f32 %v1040, %v1072
        %v1105 = vmul.f32 %v1041, %v1073
        %v1106 = vmul.f32 %v1042, %v1074
        %v1107 = vmul.f32 %v1043, %v1075
        %v1108 = vmul.f32 %v1044, %v1076
        %v1109 = vmul.f32 %v1045, %v1077
        %v1110 = vmul.f32 %v1046, %v1078
        %v1111 = vmul.f32 %v1047, %v1079
        %v1112 = vmul.f32 %v1048, %v1080
        %v1113 = vmul.f32 %v1049, %v1081
        %v1114 = vmul.f32 %v1050, %v1082
        %v1115 = vmul.f32 %v1051, %v1083
        %v1116 = vmul.f32 %v1052, %v1084
        %v1117 = vmul.f32 %v1053, %v1085
        %v1118 = vmul.f32 %v1054, %v1086
        %v1119 = vmul.f32 %v1055, %v1087
        %v1120 = vadd.f32 %v512, %v1088
        %v1121 = vadd.f32 %v513, %v1089
        %v1122 = vadd.f32 %v514, %v1090
        %v1123 = vadd.f32 %v515, %v1091
        %v1124 = vadd.f32 %v516, %v1092
        %v1125 = vadd.f32 %v517, %v1093
        %v1126 = vadd.f32 %v518, %v1094
        %v1127 = vadd.f32 %v519, %v1095
        %v1128 = vadd.f32 %v520, %v1096
        %v1129 = vadd.f32 %v521, %v1097
        %v1130 = vadd.f32 %v522, %v1098
        %v1131 = vadd.f32 %v523, %v1099
        %v1132 = vadd.f32 %v524, %v1100
        %v1133 = vadd.f32 %v525, %v1101
        %v1134 = vadd.f32 %v526, %v1102
        %v1135 = vadd.f32 %v527, %v1103
        %v1136 = vadd.f32 %v528, %v1104
        %v1137 = vadd.f32 %v529, %v1105
        %v1138 = vadd.f32 %v530, %v1106
        %v1139 = vadd.f32 %v531, %v1107
        %v1140 = vadd.f32 %v532, %v1108
        %v1141 = vadd.f32 %v533, %v1109
        %v1142 = vadd.f32 %v534, %v1110
        %v1143 = vadd.f32 %v535, %v1111
        %v1144 = vadd.f32 %v536, %v1112
        %v1145 = vadd.f32 %v537, %v1113
        %v1146 = vadd.f32 %v538, %v1114
        %v1147 = vadd.f32 %v539, %v1115
        %v1148 = vadd.f32 %v540, %v1116
        %v1149 = vadd.f32 %v541, %v1117
        %v1150 = vadd.f32 %v542, %v1118
        %v1151 = vadd.f32 %v543, %v1119
        %v1152 = vld [vmem:[#allocation2] sm:$0xff]
        %v1153 = vld [vmem:[#allocation2 + $0x8] sm:$0xff]
        %v1154 = vld [vmem:[%s406] sm:$0xff]
        %v1155 = vld [vmem:[%s406 + $0x8] sm:$0xff]
        %v1156 = vld [vmem:[%s406 + $0x10] sm:$0xff]
        %v1157 = vld [vmem:[%s406 + $0x18] sm:$0xff]
        %v1158 = vand.u32 %v1121, 4294901760
        %1159 = vmatprep.subr.mxu0 %v1158
        %v1160 = vand.u32 %v1120, 4294901760
        %1161 = vmatpush1.xpose.msra.mxu0 %v1160
        %v1162 = vand.u32 %v1123, 4294901760
        %1163 = vmatprep.subr.mxu0 %v1162
        %v1164 = vand.u32 %v1122, 4294901760
        %1165 = vmatpush1.xpose.msra.mxu0 %v1164
        %v1166 = vand.u32 %v1125, 4294901760
        %1167 = vmatprep.subr.mxu0 %v1166
        %v1168 = vand.u32 %v1124, 4294901760
        %1169 = vmatpush1.xpose.msra.mxu0 %v1168
        %v1170 = vand.u32 %v1127, 4294901760
        %1171 = vmatprep.subr.mxu0 %v1170
        %v1172 = vand.u32 %v1126, 4294901760
        %1173 = vmatpush1.xpose.msra.mxu0 %v1172
        %v1174 = vand.u32 %v1129, 4294901760
        %1175 = vmatprep.subr.mxu0 %v1174
        %v1176 = vand.u32 %v1128, 4294901760
        %1177 = vmatpush1.xpose.msra.mxu0 %v1176
        %v1178 = vand.u32 %v1131, 4294901760
        %1179 = vmatprep.subr.mxu0 %v1178
        %v1180 = vand.u32 %v1130, 4294901760
        %1181 = vmatpush1.xpose.msra.mxu0 %v1180
        %v1182 = vand.u32 %v1133, 4294901760
        %1183 = vmatprep.subr.mxu0 %v1182
        %v1184 = vand.u32 %v1132, 4294901760
        %1185 = vmatpush1.xpose.msra.mxu0 %v1184
        %v1186 = vand.u32 %v1135, 4294901760
        %1187 = vmatprep.subr.mxu0 %v1186
        %v1188 = vand.u32 %v1134, 4294901760
        %1189 = vmatpush1.xpose.msra.mxu0 %v1188
        %v1190 = vand.u32 %v1137, 4294901760
        %1191 = vmatprep.subr.mxu0 %v1190
        %v1192 = vand.u32 %v1136, 4294901760
        %1193 = vmatpush1.xpose.msra.mxu0 %v1192
        %v1194 = vand.u32 %v1139, 4294901760
        %1195 = vmatprep.subr.mxu0 %v1194
        %v1196 = vand.u32 %v1138, 4294901760
        %1197 = vmatpush1.xpose.msra.mxu0 %v1196
        %v1198 = vand.u32 %v1141, 4294901760
        %1199 = vmatprep.subr.mxu0 %v1198
        %v1200 = vand.u32 %v1140, 4294901760
        %1201 = vmatpush1.xpose.msra.mxu0 %v1200
        %v1202 = vand.u32 %v1143, 4294901760
        %1203 = vmatprep.subr.mxu0 %v1202
        %v1204 = vand.u32 %v1142, 4294901760
        %1205 = vmatpush1.xpose.msra.mxu0 %v1204
        %v1206 = vand.u32 %v1145, 4294901760
        %1207 = vmatprep.subr.mxu0 %v1206
        %v1208 = vand.u32 %v1144, 4294901760
        %1209 = vmatpush1.xpose.msra.mxu0 %v1208
        %v1210 = vand.u32 %v1147, 4294901760
        %1211 = vmatprep.subr.mxu0 %v1210
        %v1212 = vand.u32 %v1146, 4294901760
        %1213 = vmatpush1.xpose.msra.mxu0 %v1212
        %v1214 = vand.u32 %v1149, 4294901760
        %1215 = vmatprep.subr.mxu0 %v1214
        %v1216 = vand.u32 %v1148, 4294901760
        %1217 = vmatpush1.xpose.msra.mxu0 %v1216
        %v1218 = vand.u32 %v1151, 4294901760
        %1219 = vmatprep.subr.mxu0 %v1218
        %v1220 = vand.u32 %v1150, 4294901760
        %1221 = vmatpush1.xpose.msra.mxu0 %v1220
        %1222 = vmatprep.subr.mxu0 0.0
        %1223 = vmatpush1.xpose.msra.mxu0 0.0
        %1224 = vmatprep.subr.mxu0 0.0
        %1225 = vmatpush1.xpose.msra.mxu0 0.0
        %1226 = vmatprep.subr.mxu0 0.0
        %1227 = vmatpush1.xpose.msra.mxu0 0.0
        %1228 = vmatprep.subr.mxu0 0.0
        %1229 = vmatpush1.xpose.msra.mxu0 0.0
        %1230 = vmatprep.subr.mxu0 0.0
        %1231 = vmatpush1.xpose.msra.mxu0 0.0
        %1232 = vmatprep.subr.mxu0 0.0
        %1233 = vmatpush1.xpose.msra.mxu0 0.0
        %1234 = vmatprep.subr.mxu0 0.0
        %1235 = vmatpush1.xpose.msra.mxu0 0.0
        %1236 = vmatprep.subr.mxu0 0.0
        %1237 = vmatpush1.xpose.msra.mxu0 0.0
        %1238 = vmatprep.subr.mxu0 0.0
        %1239 = vmatpush1.xpose.msra.mxu0 0.0
        %1240 = vmatprep.subr.mxu0 0.0
        %1241 = vmatpush1.xpose.msra.mxu0 0.0
        %1242 = vmatprep.subr.mxu0 0.0
        %1243 = vmatpush1.xpose.msra.mxu0 0.0
        %1244 = vmatprep.subr.mxu0 0.0
        %1245 = vmatpush1.xpose.msra.mxu0 0.0
        %1246 = vmatprep.subr.mxu0 0.0
        %1247 = vmatpush1.xpose.msra.mxu0 0.0
        %1248 = vmatprep.subr.mxu0 0.0
        %1249 = vmatpush1.xpose.msra.mxu0 0.0
        %1250 = vmatprep.subr.mxu0 0.0
        %1251 = vmatpush1.xpose.msra.mxu0 0.0
        %1252 = vmatprep.subr.mxu0 0.0
        %1253 = vmatpush1.xpose.msra.mxu0 0.0
        %v1254 = vand.u32 %v1155, 4294901760
        %v1255 = vsub.f32 %v1155, %v1254
        %v1256 = vand.u32 %v1255, 4294901760
        %v1257 = vsub.f32 %v1255, %v1256
        %v1258 = vand.u32 %v1257, 4294901760
        %1259 = vmatprep.mubr.f32.mxu0 %v1258
        %v1260 = vand.u32 %v1154, 4294901760
        %v1261 = vsub.f32 %v1154, %v1260
        %v1262 = vand.u32 %v1261, 4294901760
        %v1263 = vsub.f32 %v1261, %v1262
        %v1264 = vand.u32 %v1263, 4294901760
        %1265 = vmatmul.mubr.f32.gmra.mrb[0].mxu0 %v1264
        %v1266 = vpop.f32.mrb[0].mxu0
        %v1267 = vadd.f32 0.0, %v1266
        %v1268 = vpop.f32.mrb[0].mxu0
        %v1269 = vand.u32 %v1157, 4294901760
        %v1270 = vsub.f32 %v1157, %v1269
        %v1271 = vand.u32 %v1270, 4294901760
        %v1272 = vsub.f32 %v1270, %v1271
        %v1273 = vand.u32 %v1272, 4294901760
        %1274 = vmatprep.mubr.f32.mxu0 %v1273
        %v1275 = vand.u32 %v1156, 4294901760
        %v1276 = vsub.f32 %v1156, %v1275
        %v1277 = vand.u32 %v1276, 4294901760
        %v1278 = vsub.f32 %v1276, %v1277
        %v1279 = vand.u32 %v1278, 4294901760
        %1280 = vmatmul.mubr.f32.gmra.mrb[0].mxu0 %v1279
        %v1281 = vpop.f32.mrb[0].mxu0
        %v1282 = vadd.f32 0.0, %v1281
        %v1283 = vpop.f32.mrb[0].mxu0
        %1284 = vdwg.mxu0
        %v1285 = vand.u32 %v1121, 4294901760
        %v1286 = vsub.f32 %v1121, %v1285
        %v1287 = vand.u32 %v1286, 4294901760
        %v1288 = vsub.f32 %v1286, %v1287
        %v1289 = vand.u32 %v1288, 4294901760
        %1290 = vmatprep.subr.mxu0 %v1289
        %v1291 = vand.u32 %v1120, 4294901760
        %v1292 = vsub.f32 %v1120, %v1291
        %v1293 = vand.u32 %v1292, 4294901760
        %v1294 = vsub.f32 %v1292, %v1293
        %v1295 = vand.u32 %v1294, 4294901760
        %1296 = vmatpush1.xpose.msra.mxu0 %v1295
        %v1297 = vand.u32 %v1123, 4294901760
        %v1298 = vsub.f32 %v1123, %v1297
        %v1299 = vand.u32 %v1298, 4294901760
        %v1300 = vsub.f32 %v1298, %v1299
        %v1301 = vand.u32 %v1300, 4294901760
        %1302 = vmatprep.subr.mxu0 %v1301
        %v1303 = vand.u32 %v1122, 4294901760
        %v1304 = vsub.f32 %v1122, %v1303
        %v1305 = vand.u32 %v1304, 4294901760
        %v1306 = vsub.f32 %v1304, %v1305
        %v1307 = vand.u32 %v1306, 4294901760
        %1308 = vmatpush1.xpose.msra.mxu0 %v1307
        %v1309 = vand.u32 %v1125, 4294901760
        %v1310 = vsub.f32 %v1125, %v1309
        %v1311 = vand.u32 %v1310, 4294901760
        %v1312 = vsub.f32 %v1310, %v1311
        %v1313 = vand.u32 %v1312, 4294901760
        %1314 = vmatprep.subr.mxu0 %v1313
        %v1315 = vand.u32 %v1124, 4294901760
        %v1316 = vsub.f32 %v1124, %v1315
        %v1317 = vand.u32 %v1316, 4294901760
        %v1318 = vsub.f32 %v1316, %v1317
        %v1319 = vand.u32 %v1318, 4294901760
        %1320 = vmatpush1.xpose.msra.mxu0 %v1319
        %v1321 = vand.u32 %v1127, 4294901760
        %v1322 = vsub.f32 %v1127, %v1321
        %v1323 = vand.u32 %v1322, 4294901760
        %v1324 = vsub.f32 %v1322, %v1323
        %v1325 = vand.u32 %v1324, 4294901760
        %1326 = vmatprep.subr.mxu0 %v1325
        %v1327 = vand.u32 %v1126, 4294901760
        %v1328 = vsub.f32 %v1126, %v1327
        %v1329 = vand.u32 %v1328, 4294901760
        %v1330 = vsub.f32 %v1328, %v1329
        %v1331 = vand.u32 %v1330, 4294901760
        %1332 = vmatpush1.xpose.msra.mxu0 %v1331
        %v1333 = vand.u32 %v1129, 4294901760
        %v1334 = vsub.f32 %v1129, %v1333
        %v1335 = vand.u32 %v1334, 4294901760
        %v1336 = vsub.f32 %v1334, %v1335
        %v1337 = vand.u32 %v1336, 4294901760
        %1338 = vmatprep.subr.mxu0 %v1337
        %v1339 = vand.u32 %v1128, 4294901760
        %v1340 = vsub.f32 %v1128, %v1339
        %v1341 = vand.u32 %v1340, 4294901760
        %v1342 = vsub.f32 %v1340, %v1341
        %v1343 = vand.u32 %v1342, 4294901760
        %1344 = vmatpush1.xpose.msra.mxu0 %v1343
        %v1345 = vand.u32 %v1131, 4294901760
        %v1346 = vsub.f32 %v1131, %v1345
        %v1347 = vand.u32 %v1346, 4294901760
        %v1348 = vsub.f32 %v1346, %v1347
        %v1349 = vand.u32 %v1348, 4294901760
        %1350 = vmatprep.subr.mxu0 %v1349
        %v1351 = vand.u32 %v1130, 4294901760
        %v1352 = vsub.f32 %v1130, %v1351
        %v1353 = vand.u32 %v1352, 4294901760
        %v1354 = vsub.f32 %v1352, %v1353
        %v1355 = vand.u32 %v1354, 4294901760
        %1356 = vmatpush1.xpose.msra.mxu0 %v1355
        %v1357 = vand.u32 %v1133, 4294901760
        %v1358 = vsub.f32 %v1133, %v1357
        %v1359 = vand.u32 %v1358, 4294901760
        %v1360 = vsub.f32 %v1358, %v1359
        %v1361 = vand.u32 %v1360, 4294901760
        %1362 = vmatprep.subr.mxu0 %v1361
        %v1363 = vand.u32 %v1132, 4294901760
        %v1364 = vsub.f32 %v1132, %v1363
        %v1365 = vand.u32 %v1364, 4294901760
        %v1366 = vsub.f32 %v1364, %v1365
        %v1367 = vand.u32 %v1366, 4294901760
        %1368 = vmatpush1.xpose.msra.mxu0 %v1367
        %v1369 = vand.u32 %v1135, 4294901760
        %v1370 = vsub.f32 %v1135, %v1369
        %v1371 = vand.u32 %v1370, 4294901760
        %v1372 = vsub.f32 %v1370, %v1371
        %v1373 = vand.u32 %v1372, 4294901760
        %1374 = vmatprep.subr.mxu0 %v1373
        %v1375 = vand.u32 %v1134, 4294901760
        %v1376 = vsub.f32 %v1134, %v1375
        %v1377 = vand.u32 %v1376, 4294901760
        %v1378 = vsub.f32 %v1376, %v1377
        %v1379 = vand.u32 %v1378, 4294901760
        %1380 = vmatpush1.xpose.msra.mxu0 %v1379
        %v1381 = vand.u32 %v1137, 4294901760
        %v1382 = vsub.f32 %v1137, %v1381
        %v1383 = vand.u32 %v1382, 4294901760
        %v1384 = vsub.f32 %v1382, %v1383
        %v1385 = vand.u32 %v1384, 4294901760
        %1386 = vmatprep.subr.mxu0 %v1385
        %v1387 = vand.u32 %v1136, 4294901760
        %v1388 = vsub.f32 %v1136, %v1387
        %v1389 = vand.u32 %v1388, 4294901760
        %v1390 = vsub.f32 %v1388, %v1389
        %v1391 = vand.u32 %v1390, 4294901760
        %1392 = vmatpush1.xpose.msra.mxu0 %v1391
        %v1393 = vand.u32 %v1139, 4294901760
        %v1394 = vsub.f32 %v1139, %v1393
        %v1395 = vand.u32 %v1394, 4294901760
        %v1396 = vsub.f32 %v1394, %v1395
        %v1397 = vand.u32 %v1396, 4294901760
        %1398 = vmatprep.subr.mxu0 %v1397
        %v1399 = vand.u32 %v1138, 4294901760
        %v1400 = vsub.f32 %v1138, %v1399
        %v1401 = vand.u32 %v1400, 4294901760
        %v1402 = vsub.f32 %v1400, %v1401
        %v1403 = vand.u32 %v1402, 4294901760
        %1404 = vmatpush1.xpose.msra.mxu0 %v1403
        %v1405 = vand.u32 %v1141, 4294901760
        %v1406 = vsub.f32 %v1141, %v1405
        %v1407 = vand.u32 %v1406, 4294901760
        %v1408 = vsub.f32 %v1406, %v1407
        %v1409 = vand.u32 %v1408, 4294901760
        %1410 = vmatprep.subr.mxu0 %v1409
        %v1411 = vand.u32 %v1140, 4294901760
        %v1412 = vsub.f32 %v1140, %v1411
        %v1413 = vand.u32 %v1412, 4294901760
        %v1414 = vsub.f32 %v1412, %v1413
        %v1415 = vand.u32 %v1414, 4294901760
        %1416 = vmatpush1.xpose.msra.mxu0 %v1415
        %v1417 = vand.u32 %v1143, 4294901760
        %v1418 = vsub.f32 %v1143, %v1417
        %v1419 = vand.u32 %v1418, 4294901760
        %v1420 = vsub.f32 %v1418, %v1419
        %v1421 = vand.u32 %v1420, 4294901760
        %1422 = vmatprep.subr.mxu0 %v1421
        %v1423 = vand.u32 %v1142, 4294901760
        %v1424 = vsub.f32 %v1142, %v1423
        %v1425 = vand.u32 %v1424, 4294901760
        %v1426 = vsub.f32 %v1424, %v1425
        %v1427 = vand.u32 %v1426, 4294901760
        %1428 = vmatpush1.xpose.msra.mxu0 %v1427
        %v1429 = vand.u32 %v1145, 4294901760
        %v1430 = vsub.f32 %v1145, %v1429
        %v1431 = vand.u32 %v1430, 4294901760
        %v1432 = vsub.f32 %v1430, %v1431
        %v1433 = vand.u32 %v1432, 4294901760
        %1434 = vmatprep.subr.mxu0 %v1433
        %v1435 = vand.u32 %v1144, 4294901760
        %v1436 = vsub.f32 %v1144, %v1435
        %v1437 = vand.u32 %v1436, 4294901760
        %v1438 = vsub.f32 %v1436, %v1437
        %v1439 = vand.u32 %v1438, 4294901760
        %1440 = vmatpush1.xpose.msra.mxu0 %v1439
        %v1441 = vand.u32 %v1147, 4294901760
        %v1442 = vsub.f32 %v1147, %v1441
        %v1443 = vand.u32 %v1442, 4294901760
        %v1444 = vsub.f32 %v1442, %v1443
        %v1445 = vand.u32 %v1444, 4294901760
        %1446 = vmatprep.subr.mxu0 %v1445
        %v1447 = vand.u32 %v1146, 4294901760
        %v1448 = vsub.f32 %v1146, %v1447
        %v1449 = vand.u32 %v1448, 4294901760
        %v1450 = vsub.f32 %v1448, %v1449
        %v1451 = vand.u32 %v1450, 4294901760
        %1452 = vmatpush1.xpose.msra.mxu0 %v1451
        %v1453 = vand.u32 %v1149, 4294901760
        %v1454 = vsub.f32 %v1149, %v1453
        %v1455 = vand.u32 %v1454, 4294901760
        %v1456 = vsub.f32 %v1454, %v1455
        %v1457 = vand.u32 %v1456, 4294901760
        %1458 = vmatprep.subr.mxu0 %v1457
        %v1459 = vand.u32 %v1148, 4294901760
        %v1460 = vsub.f32 %v1148, %v1459
        %v1461 = vand.u32 %v1460, 4294901760
        %v1462 = vsub.f32 %v1460, %v1461
        %v1463 = vand.u32 %v1462, 4294901760
        %1464 = vmatpush1.xpose.msra.mxu0 %v1463
        %v1465 = vand.u32 %v1151, 4294901760
        %v1466 = vsub.f32 %v1151, %v1465
        %v1467 = vand.u32 %v1466, 4294901760
        %v1468 = vsub.f32 %v1466, %v1467
        %v1469 = vand.u32 %v1468, 4294901760
        %1470 = vmatprep.subr.mxu0 %v1469
        %v1471 = vand.u32 %v1150, 4294901760
        %v1472 = vsub.f32 %v1150, %v1471
        %v1473 = vand.u32 %v1472, 4294901760
        %v1474 = vsub.f32 %v1472, %v1473
        %v1475 = vand.u32 %v1474, 4294901760
        %1476 = vmatpush1.xpose.msra.mxu0 %v1475
        %1477 = vmatprep.subr.mxu0 0.0
        %1478 = vmatpush1.xpose.msra.mxu0 0.0
        %1479 = vmatprep.subr.mxu0 0.0
        %1480 = vmatpush1.xpose.msra.mxu0 0.0
        %1481 = vmatprep.subr.mxu0 0.0
        %1482 = vmatpush1.xpose.msra.mxu0 0.0
        %1483 = vmatprep.subr.mxu0 0.0
        %1484 = vmatpush1.xpose.msra.mxu0 0.0
        %1485 = vmatprep.subr.mxu0 0.0
        %1486 = vmatpush1.xpose.msra.mxu0 0.0
        %1487 = vmatprep.subr.mxu0 0.0
        %1488 = vmatpush1.xpose.msra.mxu0 0.0
        %1489 = vmatprep.subr.mxu0 0.0
        %1490 = vmatpush1.xpose.msra.mxu0 0.0
        %1491 = vmatprep.subr.mxu0 0.0
        %1492 = vmatpush1.xpose.msra.mxu0 0.0
        %1493 = vmatprep.subr.mxu0 0.0
        %1494 = vmatpush1.xpose.msra.mxu0 0.0
        %1495 = vmatprep.subr.mxu0 0.0
        %1496 = vmatpush1.xpose.msra.mxu0 0.0
        %1497 = vmatprep.subr.mxu0 0.0
        %1498 = vmatpush1.xpose.msra.mxu0 0.0
        %1499 = vmatprep.subr.mxu0 0.0
        %1500 = vmatpush1.xpose.msra.mxu0 0.0
        %1501 = vmatprep.subr.mxu0 0.0
        %1502 = vmatpush1.xpose.msra.mxu0 0.0
        %1503 = vmatprep.subr.mxu0 0.0
        %1504 = vmatpush1.xpose.msra.mxu0 0.0
        %1505 = vmatprep.subr.mxu0 0.0
        %1506 = vmatpush1.xpose.msra.mxu0 0.0
        %1507 = vmatprep.subr.mxu0 0.0
        %1508 = vmatpush1.xpose.msra.mxu0 0.0
        %v1509 = vand.u32 %v1155, 4294901760
        %1510 = vmatprep.mubr.f32.mxu0 %v1509
        %v1511 = vand.u32 %v1154, 4294901760
        %1512 = vmatmul.mubr.f32.gmra.mrb[0].mxu0 %v1511
        %v1513 = vpop.f32.mrb[0].mxu0
        %v1514 = vadd.f32 %v1267, %v1513
        %v1515 = vpop.f32.mrb[0].mxu0
        %v1516 = vand.u32 %v1157, 4294901760
        %1517 = vmatprep.mubr.f32.mxu0 %v1516
        %v1518 = vand.u32 %v1156, 4294901760
        %1519 = vmatmul.mubr.f32.gmra.mrb[0].mxu0 %v1518
        %v1520 = vpop.f32.mrb[0].mxu0
        %v1521 = vadd.f32 %v1282, %v1520
        %v1522 = vpop.f32.mrb[0].mxu0
        %1523 = vdwg.mxu0
        %v1524 = vand.u32 %v1121, 4294901760
        %v1525 = vsub.f32 %v1121, %v1524
        %1526 = vmatprep.subr.mxu0 %v1525
        %v1527 = vand.u32 %v1120, 4294901760
        %v1528 = vsub.f32 %v1120, %v1527
        %1529 = vmatpush1.xpose.msra.mxu0 %v1528
        %v1530 = vand.u32 %v1123, 4294901760
        %v1531 = vsub.f32 %v1123, %v1530
        %1532 = vmatprep.subr.mxu0 %v1531
        %v1533 = vand.u32 %v1122, 4294901760
        %v1534 = vsub.f32 %v1122, %v1533
        %1535 = vmatpush1.xpose.msra.mxu0 %v1534
        %v1536 = vand.u32 %v1125, 4294901760
        %v1537 = vsub.f32 %v1125, %v1536
        %1538 = vmatprep.subr.mxu0 %v1537
        %v1539 = vand.u32 %v1124, 4294901760
        %v1540 = vsub.f32 %v1124, %v1539
        %1541 = vmatpush1.xpose.msra.mxu0 %v1540
        %v1542 = vand.u32 %v1127, 4294901760
        %v1543 = vsub.f32 %v1127, %v1542
        %1544 = vmatprep.subr.mxu0 %v1543
        %v1545 = vand.u32 %v1126, 4294901760
        %v1546 = vsub.f32 %v1126, %v1545
        %1547 = vmatpush1.xpose.msra.mxu0 %v1546
        %v1548 = vand.u32 %v1129, 4294901760
        %v1549 = vsub.f32 %v1129, %v1548
        %1550 = vmatprep.subr.mxu0 %v1549
        %v1551 = vand.u32 %v1128, 4294901760
        %v1552 = vsub.f32 %v1128, %v1551
        %1553 = vmatpush1.xpose.msra.mxu0 %v1552
        %v1554 = vand.u32 %v1131, 4294901760
        %v1555 = vsub.f32 %v1131, %v1554
        %1556 = vmatprep.subr.mxu0 %v1555
        %v1557 = vand.u32 %v1130, 4294901760
        %v1558 = vsub.f32 %v1130, %v1557
        %1559 = vmatpush1.xpose.msra.mxu0 %v1558
        %v1560 = vand.u32 %v1133, 4294901760
        %v1561 = vsub.f32 %v1133, %v1560
        %1562 = vmatprep.subr.mxu0 %v1561
        %v1563 = vand.u32 %v1132, 4294901760
        %v1564 = vsub.f32 %v1132, %v1563
        %1565 = vmatpush1.xpose.msra.mxu0 %v1564
        %v1566 = vand.u32 %v1135, 4294901760
        %v1567 = vsub.f32 %v1135, %v1566
        %1568 = vmatprep.subr.mxu0 %v1567
        %v1569 = vand.u32 %v1134, 4294901760
        %v1570 = vsub.f32 %v1134, %v1569
        %1571 = vmatpush1.xpose.msra.mxu0 %v1570
        %v1572 = vand.u32 %v1137, 4294901760
        %v1573 = vsub.f32 %v1137, %v1572
        %1574 = vmatprep.subr.mxu0 %v1573
        %v1575 = vand.u32 %v1136, 4294901760
        %v1576 = vsub.f32 %v1136, %v1575
        %1577 = vmatpush1.xpose.msra.mxu0 %v1576
        %v1578 = vand.u32 %v1139, 4294901760
        %v1579 = vsub.f32 %v1139, %v1578
        %1580 = vmatprep.subr.mxu0 %v1579
        %v1581 = vand.u32 %v1138, 4294901760
        %v1582 = vsub.f32 %v1138, %v1581
        %1583 = vmatpush1.xpose.msra.mxu0 %v1582
        %v1584 = vand.u32 %v1141, 4294901760
        %v1585 = vsub.f32 %v1141, %v1584
        %1586 = vmatprep.subr.mxu0 %v1585
        %v1587 = vand.u32 %v1140, 4294901760
        %v1588 = vsub.f32 %v1140, %v1587
        %1589 = vmatpush1.xpose.msra.mxu0 %v1588
        %v1590 = vand.u32 %v1143, 4294901760
        %v1591 = vsub.f32 %v1143, %v1590
        %1592 = vmatprep.subr.mxu0 %v1591
        %v1593 = vand.u32 %v1142, 4294901760
        %v1594 = vsub.f32 %v1142, %v1593
        %1595 = vmatpush1.xpose.msra.mxu0 %v1594
        %v1596 = vand.u32 %v1145, 4294901760
        %v1597 = vsub.f32 %v1145, %v1596
        %1598 = vmatprep.subr.mxu0 %v1597
        %v1599 = vand.u32 %v1144, 4294901760
        %v1600 = vsub.f32 %v1144, %v1599
        %1601 = vmatpush1.xpose.msra.mxu0 %v1600
        %v1602 = vand.u32 %v1147, 4294901760
        %v1603 = vsub.f32 %v1147, %v1602
        %1604 = vmatprep.subr.mxu0 %v1603
        %v1605 = vand.u32 %v1146, 4294901760
        %v1606 = vsub.f32 %v1146, %v1605
        %1607 = vmatpush1.xpose.msra.mxu0 %v1606
        %v1608 = vand.u32 %v1149, 4294901760
        %v1609 = vsub.f32 %v1149, %v1608
        %1610 = vmatprep.subr.mxu0 %v1609
        %v1611 = vand.u32 %v1148, 4294901760
        %v1612 = vsub.f32 %v1148, %v1611
        %1613 = vmatpush1.xpose.msra.mxu0 %v1612
        %v1614 = vand.u32 %v1151, 4294901760
        %v1615 = vsub.f32 %v1151, %v1614
        %1616 = vmatprep.subr.mxu0 %v1615
        %v1617 = vand.u32 %v1150, 4294901760
        %v1618 = vsub.f32 %v1150, %v1617
        %1619 = vmatpush1.xpose.msra.mxu0 %v1618
        %1620 = vmatprep.subr.mxu0 0.0
        %1621 = vmatpush1.xpose.msra.mxu0 0.0
        %1622 = vmatprep.subr.mxu0 0.0
        %1623 = vmatpush1.xpose.msra.mxu0 0.0
        %1624 = vmatprep.subr.mxu0 0.0
        %1625 = vmatpush1.xpose.msra.mxu0 0.0
        %1626 = vmatprep.subr.mxu0 0.0
        %1627 = vmatpush1.xpose.msra.mxu0 0.0
        %1628 = vmatprep.subr.mxu0 0.0
        %1629 = vmatpush1.xpose.msra.mxu0 0.0
        %1630 = vmatprep.subr.mxu0 0.0
        %1631 = vmatpush1.xpose.msra.mxu0 0.0
        %1632 = vmatprep.subr.mxu0 0.0
        %1633 = vmatpush1.xpose.msra.mxu0 0.0
        %1634 = vmatprep.subr.mxu0 0.0
        %1635 = vmatpush1.xpose.msra.mxu0 0.0
        %1636 = vmatprep.subr.mxu0 0.0
        %1637 = vmatpush1.xpose.msra.mxu0 0.0
        %1638 = vmatprep.subr.mxu0 0.0
        %1639 = vmatpush1.xpose.msra.mxu0 0.0
        %1640 = vmatprep.subr.mxu0 0.0
        %1641 = vmatpush1.xpose.msra.mxu0 0.0
        %1642 = vmatprep.subr.mxu0 0.0
        %1643 = vmatpush1.xpose.msra.mxu0 0.0
        %1644 = vmatprep.subr.mxu0 0.0
        %1645 = vmatpush1.xpose.msra.mxu0 0.0
        %1646 = vmatprep.subr.mxu0 0.0
        %1647 = vmatpush1.xpose.msra.mxu0 0.0
        %1648 = vmatprep.subr.mxu0 0.0
        %1649 = vmatpush1.xpose.msra.mxu0 0.0
        %1650 = vmatprep.subr.mxu0 0.0
        %1651 = vmatpush1.xpose.msra.mxu0 0.0
        %v1652 = vand.u32 %v1155, 4294901760
        %v1653 = vsub.f32 %v1155, %v1652
        %1654 = vmatprep.mubr.f32.mxu0 %v1653
        %v1655 = vand.u32 %v1154, 4294901760
        %v1656 = vsub.f32 %v1154, %v1655
        %1657 = vmatmul.mubr.f32.gmra.mrb[0].mxu0 %v1656
        %v1658 = vpop.f32.mrb[0].mxu0
        %v1659 = vadd.f32 %v1514, %v1658
        %v1660 = vpop.f32.mrb[0].mxu0
        %v1661 = vand.u32 %v1157, 4294901760
        %v1662 = vsub.f32 %v1157, %v1661
        %1663 = vmatprep.mubr.f32.mxu0 %v1662
        %v1664 = vand.u32 %v1156, 4294901760
        %v1665 = vsub.f32 %v1156, %v1664
        %1666 = vmatmul.mubr.f32.gmra.mrb[0].mxu0 %v1665
        %v1667 = vpop.f32.mrb[0].mxu0
        %v1668 = vadd.f32 %v1521, %v1667
        %v1669 = vpop.f32.mrb[0].mxu0
        %1670 = vdwg.mxu0
        %v1671 = vand.u32 %v1121, 4294901760
        %1672 = vmatprep.subr.mxu0 %v1671
        %v1673 = vand.u32 %v1120, 4294901760
        %1674 = vmatpush1.xpose.msra.mxu0 %v1673
        %v1675 = vand.u32 %v1123, 4294901760
        %1676 = vmatprep.subr.mxu0 %v1675
        %v1677 = vand.u32 %v1122, 4294901760
        %1678 = vmatpush1.xpose.msra.mxu0 %v1677
        %v1679 = vand.u32 %v1125, 4294901760
        %1680 = vmatprep.subr.mxu0 %v1679
        %v1681 = vand.u32 %v1124, 4294901760
        %1682 = vmatpush1.xpose.msra.mxu0 %v1681
        %v1683 = vand.u32 %v1127, 4294901760
        %1684 = vmatprep.subr.mxu0 %v1683
        %v1685 = vand.u32 %v1126, 4294901760
        %1686 = vmatpush1.xpose.msra.mxu0 %v1685
        %v1687 = vand.u32 %v1129, 4294901760
        %1688 = vmatprep.subr.mxu0 %v1687
        %v1689 = vand.u32 %v1128, 4294901760
        %1690 = vmatpush1.xpose.msra.mxu0 %v1689
        %v1691 = vand.u32 %v1131, 4294901760
        %1692 = vmatprep.subr.mxu0 %v1691
        %v1693 = vand.u32 %v1130, 4294901760
        %1694 = vmatpush1.xpose.msra.mxu0 %v1693
        %v1695 = vand.u32 %v1133, 4294901760
        %1696 = vmatprep.subr.mxu0 %v1695
        %v1697 = vand.u32 %v1132, 4294901760
        %1698 = vmatpush1.xpose.msra.mxu0 %v1697
        %v1699 = vand.u32 %v1135, 4294901760
        %1700 = vmatprep.subr.mxu0 %v1699
        %v1701 = vand.u32 %v1134, 4294901760
        %1702 = vmatpush1.xpose.msra.mxu0 %v1701
        %v1703 = vand.u32 %v1137, 4294901760
        %1704 = vmatprep.subr.mxu0 %v1703
        %v1705 = vand.u32 %v1136, 4294901760
        %1706 = vmatpush1.xpose.msra.mxu0 %v1705
        %v1707 = vand.u32 %v1139, 4294901760
        %1708 = vmatprep.subr.mxu0 %v1707
        %v1709 = vand.u32 %v1138, 4294901760
        %1710 = vmatpush1.xpose.msra.mxu0 %v1709
        %v1711 = vand.u32 %v1141, 4294901760
        %1712 = vmatprep.subr.mxu0 %v1711
        %v1713 = vand.u32 %v1140, 4294901760
        %1714 = vmatpush1.xpose.msra.mxu0 %v1713
        %v1715 = vand.u32 %v1143, 4294901760
        %1716 = vmatprep.subr.mxu0 %v1715
        %v1717 = vand.u32 %v1142, 4294901760
        %1718 = vmatpush1.xpose.msra.mxu0 %v1717
        %v1719 = vand.u32 %v1145, 4294901760
        %1720 = vmatprep.subr.mxu0 %v1719
        %v1721 = vand.u32 %v1144, 4294901760
        %1722 = vmatpush1.xpose.msra.mxu0 %v1721
        %v1723 = vand.u32 %v1147, 4294901760
        %1724 = vmatprep.subr.mxu0 %v1723
        %v1725 = vand.u32 %v1146, 4294901760
        %1726 = vmatpush1.xpose.msra.mxu0 %v1725
        %v1727 = vand.u32 %v1149, 4294901760
        %1728 = vmatprep.subr.mxu0 %v1727
        %v1729 = vand.u32 %v1148, 4294901760
        %1730 = vmatpush1.xpose.msra.mxu0 %v1729
        %v1731 = vand.u32 %v1151, 4294901760
        %1732 = vmatprep.subr.mxu0 %v1731
        %v1733 = vand.u32 %v1150, 4294901760
        %1734 = vmatpush1.xpose.msra.mxu0 %v1733
        %1735 = vmatprep.subr.mxu0 0.0
        %1736 = vmatpush1.xpose.msra.mxu0 0.0
        %1737 = vmatprep.subr.mxu0 0.0
        %1738 = vmatpush1.xpose.msra.mxu0 0.0
        %1739 = vmatprep.subr.mxu0 0.0
        %1740 = vmatpush1.xpose.msra.mxu0 0.0
        %1741 = vmatprep.subr.mxu0 0.0
        %1742 = vmatpush1.xpose.msra.mxu0 0.0
        %1743 = vmatprep.subr.mxu0 0.0
        %1744 = vmatpush1.xpose.msra.mxu0 0.0
        %1745 = vmatprep.subr.mxu0 0.0
        %1746 = vmatpush1.xpose.msra.mxu0 0.0
        %1747 = vmatprep.subr.mxu0 0.0
        %1748 = vmatpush1.xpose.msra.mxu0 0.0
        %1749 = vmatprep.subr.mxu0 0.0
        %1750 = vmatpush1.xpose.msra.mxu0 0.0
        %1751 = vmatprep.subr.mxu0 0.0
        %1752 = vmatpush1.xpose.msra.mxu0 0.0
        %1753 = vmatprep.subr.mxu0 0.0
        %1754 = vmatpush1.xpose.msra.mxu0 0.0
        %1755 = vmatprep.subr.mxu0 0.0
        %1756 = vmatpush1.xpose.msra.mxu0 0.0
        %1757 = vmatprep.subr.mxu0 0.0
        %1758 = vmatpush1.xpose.msra.mxu0 0.0
        %1759 = vmatprep.subr.mxu0 0.0
        %1760 = vmatpush1.xpose.msra.mxu0 0.0
        %1761 = vmatprep.subr.mxu0 0.0
        %1762 = vmatpush1.xpose.msra.mxu0 0.0
        %1763 = vmatprep.subr.mxu0 0.0
        %1764 = vmatpush1.xpose.msra.mxu0 0.0
        %1765 = vmatprep.subr.mxu0 0.0
        %1766 = vmatpush1.xpose.msra.mxu0 0.0
        %v1767 = vand.u32 %v1155, 4294901760
        %v1768 = vsub.f32 %v1155, %v1767
        %v1769 = vand.u32 %v1768, 4294901760
        %1770 = vmatprep.mubr.f32.mxu0 %v1769
        %v1771 = vand.u32 %v1154, 4294901760
        %v1772 = vsub.f32 %v1154, %v1771
        %v1773 = vand.u32 %v1772, 4294901760
        %1774 = vmatmul.mubr.f32.gmra.mrb[0].mxu0 %v1773
        %v1775 = vpop.f32.mrb[0].mxu0
        %v1776 = vadd.f32 %v1659, %v1775
        %v1777 = vpop.f32.mrb[0].mxu0
        %v1778 = vand.u32 %v1157, 4294901760
        %v1779 = vsub.f32 %v1157, %v1778
        %v1780 = vand.u32 %v1779, 4294901760
        %1781 = vmatprep.mubr.f32.mxu0 %v1780
        %v1782 = vand.u32 %v1156, 4294901760
        %v1783 = vsub.f32 %v1156, %v1782
        %v1784 = vand.u32 %v1783, 4294901760
        %1785 = vmatmul.mubr.f32.gmra.mrb[0].mxu0 %v1784
        %v1786 = vpop.f32.mrb[0].mxu0
        %v1787 = vadd.f32 %v1668, %v1786
        %v1788 = vpop.f32.mrb[0].mxu0
        %1789 = vdwg.mxu0
        %v1790 = vand.u32 %v1121, 4294901760
        %v1791 = vsub.f32 %v1121, %v1790
        %v1792 = vand.u32 %v1791, 4294901760
        %1793 = vmatprep.subr.mxu0 %v1792
        %v1794 = vand.u32 %v1120, 4294901760
        %v1795 = vsub.f32 %v1120, %v1794
        %v1796 = vand.u32 %v1795, 4294901760
        %1797 = vmatpush1.xpose.msra.mxu0 %v1796
        %v1798 = vand.u32 %v1123, 4294901760
        %v1799 = vsub.f32 %v1123, %v1798
        %v1800 = vand.u32 %v1799, 4294901760
        %1801 = vmatprep.subr.mxu0 %v1800
        %v1802 = vand.u32 %v1122, 4294901760
        %v1803 = vsub.f32 %v1122, %v1802
        %v1804 = vand.u32 %v1803, 4294901760
        %1805 = vmatpush1.xpose.msra.mxu0 %v1804
        %v1806 = vand.u32 %v1125, 4294901760
        %v1807 = vsub.f32 %v1125, %v1806
        %v1808 = vand.u32 %v1807, 4294901760
        %1809 = vmatprep.subr.mxu0 %v1808
        %v1810 = vand.u32 %v1124, 4294901760
        %v1811 = vsub.f32 %v1124, %v1810
        %v1812 = vand.u32 %v1811, 4294901760
        %1813 = vmatpush1.xpose.msra.mxu0 %v1812
        %v1814 = vand.u32 %v1127, 4294901760
        %v1815 = vsub.f32 %v1127, %v1814
        %v1816 = vand.u32 %v1815, 4294901760
        %1817 = vmatprep.subr.mxu0 %v1816
        %v1818 = vand.u32 %v1126, 4294901760
        %v1819 = vsub.f32 %v1126, %v1818
        %v1820 = vand.u32 %v1819, 4294901760
        %1821 = vmatpush1.xpose.msra.mxu0 %v1820
        %v1822 = vand.u32 %v1129, 4294901760
        %v1823 = vsub.f32 %v1129, %v1822
        %v1824 = vand.u32 %v1823, 4294901760
        %1825 = vmatprep.subr.mxu0 %v1824
        %v1826 = vand.u32 %v1128, 4294901760
        %v1827 = vsub.f32 %v1128, %v1826
        %v1828 = vand.u32 %v1827, 4294901760
        %1829 = vmatpush1.xpose.msra.mxu0 %v1828
        %v1830 = vand.u32 %v1131, 4294901760
        %v1831 = vsub.f32 %v1131, %v1830
        %v1832 = vand.u32 %v1831, 4294901760
        %1833 = vmatprep.subr.mxu0 %v1832
        %v1834 = vand.u32 %v1130, 4294901760
        %v1835 = vsub.f32 %v1130, %v1834
        %v1836 = vand.u32 %v1835, 4294901760
        %1837 = vmatpush1.xpose.msra.mxu0 %v1836
        %v1838 = vand.u32 %v1133, 4294901760
        %v1839 = vsub.f32 %v1133, %v1838
        %v1840 = vand.u32 %v1839, 4294901760
        %1841 = vmatprep.subr.mxu0 %v1840
        %v1842 = vand.u32 %v1132, 4294901760
        %v1843 = vsub.f32 %v1132, %v1842
        %v1844 = vand.u32 %v1843, 4294901760
        %1845 = vmatpush1.xpose.msra.mxu0 %v1844
        %v1846 = vand.u32 %v1135, 4294901760
        %v1847 = vsub.f32 %v1135, %v1846
        %v1848 = vand.u32 %v1847, 4294901760
        %1849 = vmatprep.subr.mxu0 %v1848
        %v1850 = vand.u32 %v1134, 4294901760
        %v1851 = vsub.f32 %v1134, %v1850
        %v1852 = vand.u32 %v1851, 4294901760
        %1853 = vmatpush1.xpose.msra.mxu0 %v1852
        %v1854 = vand.u32 %v1137, 4294901760
        %v1855 = vsub.f32 %v1137, %v1854
        %v1856 = vand.u32 %v1855, 4294901760
        %1857 = vmatprep.subr.mxu0 %v1856
        %v1858 = vand.u32 %v1136, 4294901760
        %v1859 = vsub.f32 %v1136, %v1858
        %v1860 = vand.u32 %v1859, 4294901760
        %1861 = vmatpush1.xpose.msra.mxu0 %v1860
        %v1862 = vand.u32 %v1139, 4294901760
        %v1863 = vsub.f32 %v1139, %v1862
        %v1864 = vand.u32 %v1863, 4294901760
        %1865 = vmatprep.subr.mxu0 %v1864
        %v1866 = vand.u32 %v1138, 4294901760
        %v1867 = vsub.f32 %v1138, %v1866
        %v1868 = vand.u32 %v1867, 4294901760
        %1869 = vmatpush1.xpose.msra.mxu0 %v1868
        %v1870 = vand.u32 %v1141, 4294901760
        %v1871 = vsub.f32 %v1141, %v1870
        %v1872 = vand.u32 %v1871, 4294901760
        %1873 = vmatprep.subr.mxu0 %v1872
        %v1874 = vand.u32 %v1140, 4294901760
        %v1875 = vsub.f32 %v1140, %v1874
        %v1876 = vand.u32 %v1875, 4294901760
        %1877 = vmatpush1.xpose.msra.mxu0 %v1876
        %v1878 = vand.u32 %v1143, 4294901760
        %v1879 = vsub.f32 %v1143, %v1878
        %v1880 = vand.u32 %v1879, 4294901760
        %1881 = vmatprep.subr.mxu0 %v1880
        %v1882 = vand.u32 %v1142, 4294901760
        %v1883 = vsub.f32 %v1142, %v1882
        %v1884 = vand.u32 %v1883, 4294901760
        %1885 = vmatpush1.xpose.msra.mxu0 %v1884
        %v1886 = vand.u32 %v1145, 4294901760
        %v1887 = vsub.f32 %v1145, %v1886
        %v1888 = vand.u32 %v1887, 4294901760
        %1889 = vmatprep.subr.mxu0 %v1888
        %v1890 = vand.u32 %v1144, 4294901760
        %v1891 = vsub.f32 %v1144, %v1890
        %v1892 = vand.u32 %v1891, 4294901760
        %1893 = vmatpush1.xpose.msra.mxu0 %v1892
        %v1894 = vand.u32 %v1147, 4294901760
        %v1895 = vsub.f32 %v1147, %v1894
        %v1896 = vand.u32 %v1895, 4294901760
        %1897 = vmatprep.subr.mxu0 %v1896
        %v1898 = vand.u32 %v1146, 4294901760
        %v1899 = vsub.f32 %v1146, %v1898
        %v1900 = vand.u32 %v1899, 4294901760
        %1901 = vmatpush1.xpose.msra.mxu0 %v1900
        %v1902 = vand.u32 %v1149, 4294901760
        %v1903 = vsub.f32 %v1149, %v1902
        %v1904 = vand.u32 %v1903, 4294901760
        %1905 = vmatprep.subr.mxu0 %v1904
        %v1906 = vand.u32 %v1148, 4294901760
        %v1907 = vsub.f32 %v1148, %v1906
        %v1908 = vand.u32 %v1907, 4294901760
        %1909 = vmatpush1.xpose.msra.mxu0 %v1908
        %v1910 = vand.u32 %v1151, 4294901760
        %v1911 = vsub.f32 %v1151, %v1910
        %v1912 = vand.u32 %v1911, 4294901760
        %1913 = vmatprep.subr.mxu0 %v1912
        %v1914 = vand.u32 %v1150, 4294901760
        %v1915 = vsub.f32 %v1150, %v1914
        %v1916 = vand.u32 %v1915, 4294901760
        %1917 = vmatpush1.xpose.msra.mxu0 %v1916
        %1918 = vmatprep.subr.mxu0 0.0
        %1919 = vmatpush1.xpose.msra.mxu0 0.0
        %1920 = vmatprep.subr.mxu0 0.0
        %1921 = vmatpush1.xpose.msra.mxu0 0.0
        %1922 = vmatprep.subr.mxu0 0.0
        %1923 = vmatpush1.xpose.msra.mxu0 0.0
        %1924 = vmatprep.subr.mxu0 0.0
        %1925 = vmatpush1.xpose.msra.mxu0 0.0
        %1926 = vmatprep.subr.mxu0 0.0
        %1927 = vmatpush1.xpose.msra.mxu0 0.0
        %1928 = vmatprep.subr.mxu0 0.0
        %1929 = vmatpush1.xpose.msra.mxu0 0.0
        %1930 = vmatprep.subr.mxu0 0.0
        %1931 = vmatpush1.xpose.msra.mxu0 0.0
        %1932 = vmatprep.subr.mxu0 0.0
        %1933 = vmatpush1.xpose.msra.mxu0 0.0
        %1934 = vmatprep.subr.mxu0 0.0
        %1935 = vmatpush1.xpose.msra.mxu0 0.0
        %1936 = vmatprep.subr.mxu0 0.0
        %1937 = vmatpush1.xpose.msra.mxu0 0.0
        %1938 = vmatprep.subr.mxu0 0.0
        %1939 = vmatpush1.xpose.msra.mxu0 0.0
        %1940 = vmatprep.subr.mxu0 0.0
        %1941 = vmatpush1.xpose.msra.mxu0 0.0
        %1942 = vmatprep.subr.mxu0 0.0
        %1943 = vmatpush1.xpose.msra.mxu0 0.0
        %1944 = vmatprep.subr.mxu0 0.0
        %1945 = vmatpush1.xpose.msra.mxu0 0.0
        %1946 = vmatprep.subr.mxu0 0.0
        %1947 = vmatpush1.xpose.msra.mxu0 0.0
        %1948 = vmatprep.subr.mxu0 0.0
        %1949 = vmatpush1.xpose.msra.mxu0 0.0
        %v1950 = vand.u32 %v1155, 4294901760
        %1951 = vmatprep.mubr.f32.mxu0 %v1950
        %v1952 = vand.u32 %v1154, 4294901760
        %1953 = vmatmul.mubr.f32.gmra.mrb[0].mxu0 %v1952
        %v1954 = vpop.f32.mrb[0].mxu0
        %v1955 = vadd.f32 %v1776, %v1954
        %v1956 = vpop.f32.mrb[0].mxu0
        %v1957 = vand.u32 %v1157, 4294901760
        %1958 = vmatprep.mubr.f32.mxu0 %v1957
        %v1959 = vand.u32 %v1156, 4294901760
        %1960 = vmatmul.mubr.f32.gmra.mrb[0].mxu0 %v1959
        %v1961 = vpop.f32.mrb[0].mxu0
        %v1962 = vadd.f32 %v1787, %v1961
        %v1963 = vpop.f32.mrb[0].mxu0
        %1964 = vdwg.mxu0
        %v1965 = vand.u32 %v1121, 4294901760
        %1966 = vmatprep.subr.mxu0 %v1965
        %v1967 = vand.u32 %v1120, 4294901760
        %1968 = vmatpush1.xpose.msra.mxu0 %v1967
        %v1969 = vand.u32 %v1123, 4294901760
        %1970 = vmatprep.subr.mxu0 %v1969
        %v1971 = vand.u32 %v1122, 4294901760
        %1972 = vmatpush1.xpose.msra.mxu0 %v1971
        %v1973 = vand.u32 %v1125, 4294901760
        %1974 = vmatprep.subr.mxu0 %v1973
        %v1975 = vand.u32 %v1124, 4294901760
        %1976 = vmatpush1.xpose.msra.mxu0 %v1975
        %v1977 = vand.u32 %v1127, 4294901760
        %1978 = vmatprep.subr.mxu0 %v1977
        %v1979 = vand.u32 %v1126, 4294901760
        %1980 = vmatpush1.xpose.msra.mxu0 %v1979
        %v1981 = vand.u32 %v1129, 4294901760
        %1982 = vmatprep.subr.mxu0 %v1981
        %v1983 = vand.u32 %v1128, 4294901760
        %1984 = vmatpush1.xpose.msra.mxu0 %v1983
        %v1985 = vand.u32 %v1131, 4294901760
        %1986 = vmatprep.subr.mxu0 %v1985
        %v1987 = vand.u32 %v1130, 4294901760
        %1988 = vmatpush1.xpose.msra.mxu0 %v1987
        %v1989 = vand.u32 %v1133, 4294901760
        %1990 = vmatprep.subr.mxu0 %v1989
        %v1991 = vand.u32 %v1132, 4294901760
        %1992 = vmatpush1.xpose.msra.mxu0 %v1991
        %v1993 = vand.u32 %v1135, 4294901760
        %1994 = vmatprep.subr.mxu0 %v1993
        %v1995 = vand.u32 %v1134, 4294901760
        %1996 = vmatpush1.xpose.msra.mxu0 %v1995
        %v1997 = vand.u32 %v1137, 4294901760
        %1998 = vmatprep.subr.mxu0 %v1997
        %v1999 = vand.u32 %v1136, 4294901760
        %2000 = vmatpush1.xpose.msra.mxu0 %v1999
        %v2001 = vand.u32 %v1139, 4294901760
        %2002 = vmatprep.subr.mxu0 %v2001
        %v2003 = vand.u32 %v1138, 4294901760
        %2004 = vmatpush1.xpose.msra.mxu0 %v2003
        %v2005 = vand.u32 %v1141, 4294901760
        %2006 = vmatprep.subr.mxu0 %v2005
        %v2007 = vand.u32 %v1140, 4294901760
        %2008 = vmatpush1.xpose.msra.mxu0 %v2007
        %v2009 = vand.u32 %v1143, 4294901760
        %2010 = vmatprep.subr.mxu0 %v2009
        %v2011 = vand.u32 %v1142, 4294901760
        %2012 = vmatpush1.xpose.msra.mxu0 %v2011
        %v2013 = vand.u32 %v1145, 4294901760
        %2014 = vmatprep.subr.mxu0 %v2013
        %v2015 = vand.u32 %v1144, 4294901760
        %2016 = vmatpush1.xpose.msra.mxu0 %v2015
        %v2017 = vand.u32 %v1147, 4294901760
        %2018 = vmatprep.subr.mxu0 %v2017
        %v2019 = vand.u32 %v1146, 4294901760
        %2020 = vmatpush1.xpose.msra.mxu0 %v2019
        %v2021 = vand.u32 %v1149, 4294901760
        %2022 = vmatprep.subr.mxu0 %v2021
        %v2023 = vand.u32 %v1148, 4294901760
        %2024 = vmatpush1.xpose.msra.mxu0 %v2023
        %v2025 = vand.u32 %v1151, 4294901760
        %2026 = vmatprep.subr.mxu0 %v2025
        %v2027 = vand.u32 %v1150, 4294901760
        %2028 = vmatpush1.xpose.msra.mxu0 %v2027
        %2029 = vmatprep.subr.mxu0 0.0
        %2030 = vmatpush1.xpose.msra.mxu0 0.0
        %2031 = vmatprep.subr.mxu0 0.0
        %2032 = vmatpush1.xpose.msra.mxu0 0.0
        %2033 = vmatprep.subr.mxu0 0.0
        %2034 = vmatpush1.xpose.msra.mxu0 0.0
        %2035 = vmatprep.subr.mxu0 0.0
        %2036 = vmatpush1.xpose.msra.mxu0 0.0
        %2037 = vmatprep.subr.mxu0 0.0
        %2038 = vmatpush1.xpose.msra.mxu0 0.0
        %2039 = vmatprep.subr.mxu0 0.0
        %2040 = vmatpush1.xpose.msra.mxu0 0.0
        %2041 = vmatprep.subr.mxu0 0.0
        %2042 = vmatpush1.xpose.msra.mxu0 0.0
        %2043 = vmatprep.subr.mxu0 0.0
        %2044 = vmatpush1.xpose.msra.mxu0 0.0
        %2045 = vmatprep.subr.mxu0 0.0
        %2046 = vmatpush1.xpose.msra.mxu0 0.0
        %2047 = vmatprep.subr.mxu0 0.0
        %2048 = vmatpush1.xpose.msra.mxu0 0.0
        %2049 = vmatprep.subr.mxu0 0.0
        %2050 = vmatpush1.xpose.msra.mxu0 0.0
        %2051 = vmatprep.subr.mxu0 0.0
        %2052 = vmatpush1.xpose.msra.mxu0 0.0
        %2053 = vmatprep.subr.mxu0 0.0
        %2054 = vmatpush1.xpose.msra.mxu0 0.0
        %2055 = vmatprep.subr.mxu0 0.0
        %2056 = vmatpush1.xpose.msra.mxu0 0.0
        %2057 = vmatprep.subr.mxu0 0.0
        %2058 = vmatpush1.xpose.msra.mxu0 0.0
        %2059 = vmatprep.subr.mxu0 0.0
        %2060 = vmatpush1.xpose.msra.mxu0 0.0
        %v2061 = vand.u32 %v1155, 4294901760
        %2062 = vmatprep.mubr.f32.mxu0 %v2061
        %v2063 = vand.u32 %v1154, 4294901760
        %2064 = vmatmul.mubr.f32.gmra.mrb[0].mxu0 %v2063
        %v2065 = vpop.f32.mrb[0].mxu0
        %v2066 = vadd.f32 %v1955, %v2065
        %v2067 = vpop.f32.mrb[0].mxu0
        %v2068 = vand.u32 %v1157, 4294901760
        %2069 = vmatprep.mubr.f32.mxu0 %v2068
        %v2070 = vand.u32 %v1156, 4294901760
        %2071 = vmatmul.mubr.f32.gmra.mrb[0].mxu0 %v2070
        %v2072 = vpop.f32.mrb[0].mxu0
        %v2073 = vadd.f32 %v1962, %v2072
        %v2074 = vpop.f32.mrb[0].mxu0
        %2075 = vdwg.mxu0
        %v2076 = vadd.f32 %v1152, %v2066
        %v2077 = vadd.f32 %v1153, %v2073
        %2078 = vst [vmem:[#allocation2] sm:$0xff] %v2076
        %2079 = vst [vmem:[#allocation2 + $0x8] sm:$0xff] %v2077
        %p2080 = scmp.eq.s32.totalorder %s37, 1
        // Predicated region
        $region69: #{tpu_custom_call.1} parent=47 // pred_check
          %p2081 = pneg %p2080
        $region70: #{tpu_custom_call.1} parent=47 // pred_check_branch
          %2083 = sbr.rel (%p2081) target = $region72
        $region71: #{tpu_custom_call.1} parent=47 // pred_region
          %v2084 = vld [vmem:[%s498] sm:$0x1]
          %v2085 = vld [vmem:[%s501] sm:$0x1]
          %v2086 = vmax.f32 %v2085, 0.0
          %v2087 = vand.u32 2147483647, %v2085
          %v2088 = vsub.f32 0.0, %v2087
          %v2089 = vmul.f32 %v2088, 1.442695
          %v2090 = vpow.pop %v2089
          %v2091 = vadd.f32 %v2090, 1.0
          %v2092 = vlog2.pop %v2091
          %v2093 = vmul.f32 %v2092, 0.6931472
          %v2094 = vmul.f32 -0.5, %v2090
          %v2095 = vadd.f32 %v2094, 1.0
          %v2096 = vmul.f32 %v2095, %v2090
          %v2097 = vand.u32 2147483647, %v2090
          %vm2098 = vcmp.lt.f32.partialorder %v2097, 0.0004427343
          %v2099 = vsel %vm2098, %v2096, %v2093
          %v2100 = vadd.f32 %v2086, %v2099
          %v2101 = vld [vmem:[%s504] sm:$0x1]
          %v2102 = vmul.f32 %v2100, %v2101
          %v2103 = vadd.f32 %v2084, %v2102
          %v2104 = vld [vmem:[#allocation2] sm:$0xff]
          %v2105 = vld [vmem:[#allocation2 + $0x8] sm:$0xff]
          %v2107 = vlaneseq
          %v2108 = vshrl.u32 %v2107, 7
          %v2109 = vsub.s32 0, %v2108
          %v2110 = vrot.slane %v2103, %v2109
          %v2112 = vadd.f32 %v2104, %v2110
          %v2113 = vadd.f32 %v2105, %v2110
          %2114 = vst [vmem:[%s487] sm:$0xff] %v2112
          %2115 = vst [vmem:[%s487 + $0x8] sm:$0xff] %v2113
        $region72: #{tpu_custom_call.1} parent=47 // pred_fallthru
          _
        %s2116 = sand.u32 %s249, 1
        %s2117 = scalar_lea.sflag [#allocation5], %s2116
        %s2118 = sand.u32 %s249, 1
        %s2119 = smul.addr %s2118, 16
        %s2120 = scalar_lea.vmem [#allocation11], %s2119
        // Predicated region
        $region73: #{tpu_custom_call.1} parent=47 // pred_check
          %p2121 = pneg %p259
        $region74: #{tpu_custom_call.1} parent=47 // pred_check_branch
          %2123 = sbr.rel (%p2121) target = $region76
        $region75: #{tpu_custom_call.1} parent=47 // pred_region
          %s2124 = smul.u32 2, %s35
          %s2126 = ssub.s32 256, 256
          %2127 = vsyncadd %s2117, %s2126
          %s2128 = smul.addr %s2124, 2
          %s2129 = sadd.s32 %s36, %s2128
          %s2130 = smul.addr %s2129, 128
          %s2131 = scalar_lea.hbm %s7, %s2130
          %s2132 = sshll.u32 %s2120, 4
          %s2133 = int_to_ptr.vmem [resolvable:$true] %s2132
          %2138 = dma.vmem_to_hbm [thread:$0]  %s2133, 256, %s2131, %s2117, 128, 256, 8
        $region76: #{tpu_custom_call.1} parent=47 // pred_fallthru
          _
      $region48: #{tpu_custom_call.1} parent=5 // pred_fallthru
        _
      %p2139 = scmp.le.s32.totalorder 2, %s25
      // Predicated region
      $region77: #{tpu_custom_call.1} parent=5 // pred_check
        %p2140 = pneg %p2139
      $region78: #{tpu_custom_call.1} parent=5 // pred_check_branch
        %2142 = sbr.rel (%p2140) target = $region80
      $region79: #{tpu_custom_call.1} parent=5 // pred_region
        %s2143 = ssub.s32 %s25, 2
        // Predicated region
        $region81: #{tpu_custom_call.1} parent=79 // pred_check
          %p2144 = pneg %p265
        $region82: #{tpu_custom_call.1} parent=79 // pred_check_branch
          %2146 = sbr.rel (%p2144) target = $region84
        $region83: #{tpu_custom_call.1} parent=79 // pred_region
          %s2147 = sand.u32 %s250, 1
          %s2148 = scalar_lea.sflag [#allocation5], %s2147
          %s2149 = sand.u32 %s250, 1
          %s2150 = smul.addr %s2149, 16
          %s2151 = scalar_lea.vmem [#allocation11], %s2150
          %2152 = dma.done %s2148, 256
        $region84: #{tpu_custom_call.1} parent=79 // pred_fallthru
          _
      $region80: #{tpu_custom_call.1} parent=5 // pred_fallthru
        _
    $region6: #{tpu_custom_call.1} parent=1 // loop_footer
      %s29 = sadd.s32 1, %s25
    $region7: #{tpu_custom_call.1} parent=1 // loop_footer_branch
      %24 = sbr.rel target = $region3
    $region8: #{tpu_custom_call.1} parent=1 // loop_exit
      _
    %2153 = vsyncpa [#allocation4], 1
    %s2154 = scalar_lea.sflag [#allocation4], 1
    %2155 = vsyncpa %s2154, 1
    %2156 = vsyncpa [#allocation7], 1
    %s2157 = scalar_lea.sflag [#allocation7], 1
    %2158 = vsyncpa %s2157, 1
    %2159 = vsyncpa [#allocation10], 1
    %s2160 = scalar_lea.sflag [#allocation10], 1
    %2161 = vsyncpa %s2160, 1
    %2162 = vsyncpa [#allocation5], 1
    %s2163 = scalar_lea.sflag [#allocation5], 1
    %2164 = vsyncpa %s2163, 1

</llo_original>
